<compile_context>
chip_gen: v7x
topology: tpu7x:2x2x1
jax: 0.10.0
libtpu: 0.0.40
codegen_flags: <defaults>
</compile_context>

<pallas_src>
import functools

import jax
import jax.numpy as jnp
from jax.experimental import pallas as pl
from jax.experimental.pallas import tpu as pltpu

EPS = 1e-5


def _bn_train(h, gamma=None, beta=None):
    """BatchNorm1d, training mode: single-pass batch stats, biased variance."""
    n = h.shape[0]
    s = jnp.sum(h, axis=0, keepdims=True)
    sq = jnp.sum(h * h, axis=0, keepdims=True)
    mean = s * (1.0 / n)
    var = jnp.maximum(sq * (1.0 / n) - mean * mean, 0.0)
    y = (h - mean) * jax.lax.rsqrt(var + EPS)
    if gamma is not None:
        y = y * gamma + beta
    return y


# ----------------------------------------------------------------------------
# Fused kernel: backbone stem + 3-layer projection MLP + 2-layer predictor.
# grid=(2,) over the two views; all weights are VMEM-resident across both
# grid steps (constant index_map). BN stats are per-view (matches two separate
# encoder(x1)/encoder(x2) calls in PyTorch).
# ----------------------------------------------------------------------------
def simsiam_kernel(x_ref, wb_ref,
                   w1_ref, g1_ref, b1_ref,
                   w2_ref, g2_ref, b2_ref,
                   w3_ref, bias3_ref,
                   wp1_ref, gp_ref, bp_ref,
                   wp2_ref, bp2_ref,
                   p_ref, z_ref):
    x = x_ref[0]  # (B, C*H*W), bf16

    # backbone stem: flatten + Linear (stand-in for base_encoder trunk)
    feat = jnp.dot(x, wb_ref[...], preferred_element_type=jnp.float32)

    # encoder.fc[0..2]: Linear(prev_dim, prev_dim, bias=False) -> BN -> ReLU
    h = jnp.dot(feat.astype(jnp.bfloat16), w1_ref[...],
                preferred_element_type=jnp.float32)
    h = jnp.maximum(_bn_train(h, g1_ref[...], b1_ref[...]), 0.0)

    # encoder.fc[3..5]: Linear(prev_dim, prev_dim, bias=False) -> BN -> ReLU
    h = jnp.dot(h.astype(jnp.bfloat16), w2_ref[...],
                preferred_element_type=jnp.float32)
    h = jnp.maximum(_bn_train(h, g2_ref[...], b2_ref[...]), 0.0)

    # encoder.fc[6]: original fc Linear(prev_dim, dim) with (frozen) bias
    h = jnp.dot(h.astype(jnp.bfloat16), w3_ref[...],
                preferred_element_type=jnp.float32) + bias3_ref[...]

    # encoder.fc[7]: BatchNorm1d(dim, affine=False)  -> z (f32 output)
    z = _bn_train(h)
    z_ref[0] = z.astype(z_ref.dtype)

    # predictor[0..2]: Linear(dim, pred_dim, bias=False) -> BN -> ReLU
    hp = jnp.dot(z.astype(jnp.bfloat16), wp1_ref[...],
                 preferred_element_type=jnp.float32)
    hp = jnp.maximum(_bn_train(hp, gp_ref[...], bp_ref[...]), 0.0)

    # predictor[3]: Linear(pred_dim, dim) with bias  -> p
    p = jnp.dot(hp.astype(jnp.bfloat16), wp2_ref[...],
                preferred_element_type=jnp.float32) + bp2_ref[...]
    p_ref[0] = p.astype(p_ref.dtype)


def _cost_estimate(B, F, prev_dim, dim, pred_dim):
    # per-view matmul (M, N, K) triples
    mm = [(B, prev_dim, F), (B, prev_dim, prev_dim), (B, prev_dim, prev_dim),
          (B, dim, prev_dim), (B, pred_dim, dim), (B, dim, pred_dim)]
    flops = 2 * sum(2 * m * n * k for (m, n, k) in mm)          # 2 views
    transcendentals = 2 * (prev_dim + prev_dim + dim + pred_dim)  # rsqrt per BN
    w_bytes = 2 * (F * prev_dim + 2 * prev_dim * prev_dim
                   + prev_dim * dim + dim * pred_dim + pred_dim * dim)  # bf16
    bn_bytes = 4 * (4 * prev_dim + 2 * pred_dim + 2 * dim)
    io_bytes = 2 * B * F * 2 + 2 * 2 * B * dim * 4  # bf16 in, 2x f32 out
    return pl.CostEstimate(flops=flops, transcendentals=transcendentals,
                           bytes_accessed=w_bytes + bn_bytes + io_bytes)


def simsiam_pallas(x_stack, params):
    """x_stack: (2, B, F) bf16.  Returns (p_stack, z_stack), each (2, B, dim) f32."""
    _, B, F = x_stack.shape
    prev_dim = params["w1"].shape[0]
    dim = params["w3"].shape[1]
    pred_dim = params["wp1"].shape[1]

    weight_args = (
        params["wb"],
        params["w1"], params["g1"], params["b1"],
        params["w2"], params["g2"], params["b2"],
        params["w3"], params["bias3"],
        params["wp1"], params["gp"], params["bp"],
        params["wp2"], params["bp2"],
    )

    def whole(arr):
        # Same block for every grid step -> weight stays VMEM-resident.
        nd = arr.ndim
        return pl.BlockSpec(arr.shape, lambda v, _nd=nd: (0,) * _nd)

    in_specs = ([pl.BlockSpec((1, B, F), lambda v: (v, 0, 0))]
                + [whole(a) for a in weight_args])
    out_specs = (pl.BlockSpec((1, B, dim), lambda v: (v, 0, 0)),
                 pl.BlockSpec((1, B, dim), lambda v: (v, 0, 0)))

    p_stack, z_stack = pl.pallas_call(
        simsiam_kernel,
        grid=(2,),
        out_shape=(jax.ShapeDtypeStruct((2, B, dim), jnp.float32),
                   jax.ShapeDtypeStruct((2, B, dim), jnp.float32)),
        in_specs=in_specs,
        out_specs=out_specs,
        compiler_params=pltpu.CompilerParams(
            dimension_semantics=("parallel",),      # 2 views -> 2 TCs on v7x
            vmem_limit_bytes=32 * 1024 * 1024),
        cost_estimate=_cost_estimate(B, F, prev_dim, dim, pred_dim),
    )(x_stack, *weight_args)
    return p_stack, z_stack


@jax.jit
def simsiam_forward(x1, x2, params):
    B = x1.shape[0]
    # flatten NCHW + bf16 cast once in the wrapper (halves input DMA bytes).
    x_stack = jnp.stack(
        [x1.reshape(B, -1), x2.reshape(B, -1)], axis=0).astype(jnp.bfloat16)

    p_stack, z_stack = simsiam_pallas(x_stack, params)

    p1, p2 = p_stack[0], p_stack[1]
    z1, z2 = z_stack[0], z_stack[1]
    # z1.detach(), z2.detach()
    return p1, p2, jax.lax.stop_gradient(z1), jax.lax.stop_gradient(z2)


def init_params(key, in_feats, prev_dim, dim, pred_dim):
    ks = jax.random.split(key, 6)

    def lin(k, fan_in, fan_out):
        w = (jax.random.normal(k, (fan_in, fan_out), jnp.float32)
             / jnp.sqrt(jnp.float32(fan_in)))
        return w.astype(jnp.bfloat16)   # bf16-native MXU weights

    f32 = jnp.float32
    return {
        # backbone stem (stand-in for the base encoder)
        "wb": lin(ks[0], in_feats, prev_dim),
        # projection MLP (encoder.fc)
        "w1": lin(ks[1], prev_dim, prev_dim),
        "g1": jnp.ones((1, prev_dim), f32),
        "b1": jnp.zeros((1, prev_dim), f32),
        "w2": lin(ks[2], prev_dim, prev_dim),
        "g2": jnp.ones((1, prev_dim), f32),
        "b2": jnp.zeros((1, prev_dim), f32),
        "w3": lin(ks[3], prev_dim, dim),
        "bias3": jnp.zeros((1, dim), f32),   # fc[6].bias (frozen in torch)
        # predictor
        "wp1": lin(ks[4], dim, pred_dim),
        "gp": jnp.ones((1, pred_dim), f32),
        "bp": jnp.zeros((1, pred_dim), f32),
        "wp2": lin(ks[5], pred_dim, dim),
        "bp2": jnp.zeros((1, dim), f32),
    }


if __name__ == "__main__":
    # Small shapes consistent with the module (dim / pred_dim scaled down,
    # all feature widths lane-dense multiples of 128).
    B, C, H, W = 8, 4, 16, 16
    PREV_DIM, DIM, PRED_DIM = 128, 256, 128

    key = jax.random.PRNGKey(0)
    k_x1, k_x2, k_p = jax.random.split(key, 3)
    x1 = jax.random.normal(k_x1, (B, C, H, W), jnp.float32)   # NCHW, view 1
    x2 = jax.random.normal(k_x2, (B, C, H, W), jnp.float32)   # NCHW, view 2

    params = init_params(k_p, C * H * W, PREV_DIM, DIM, PRED_DIM)

    p1, p2, z1, z2 = simsiam_forward(x1, x2, params)
    jax.block_until_ready((p1, p2, z1, z2))

    assert p1.shape == (B, DIM) and p2.shape == (B, DIM)
    assert z1.shape == (B, DIM) and z2.shape == (B, DIM)
    assert all(bool(jnp.isfinite(t).all()) for t in (p1, p2, z1, z2))
    print("KERNEL_OK")
</pallas_src>

<mosaic_0001>
module attributes {stable_mosaic.version = 11 : i64} {
  func.func @simsiam_kernel(%arg0: i32, %arg1: memref<1x8x1024xbf16, #tpu.memory_space<vmem>>, %arg2: memref<1024x128xbf16, #tpu.memory_space<vmem>>, %arg3: memref<128x128xbf16, #tpu.memory_space<vmem>>, %arg4: memref<1x128xf32, #tpu.memory_space<vmem>>, %arg5: memref<1x128xf32, #tpu.memory_space<vmem>>, %arg6: memref<128x128xbf16, #tpu.memory_space<vmem>>, %arg7: memref<1x128xf32, #tpu.memory_space<vmem>>, %arg8: memref<1x128xf32, #tpu.memory_space<vmem>>, %arg9: memref<128x256xbf16, #tpu.memory_space<vmem>>, %arg10: memref<1x256xf32, #tpu.memory_space<vmem>>, %arg11: memref<256x128xbf16, #tpu.memory_space<vmem>>, %arg12: memref<1x128xf32, #tpu.memory_space<vmem>>, %arg13: memref<1x128xf32, #tpu.memory_space<vmem>>, %arg14: memref<128x256xbf16, #tpu.memory_space<vmem>>, %arg15: memref<1x256xf32, #tpu.memory_space<vmem>>, %arg16: memref<1x8x256xf32, #tpu.memory_space<vmem>>, %arg17: memref<1x8x256xf32, #tpu.memory_space<vmem>>) attributes {dimension_semantics = [#tpu.dimension_semantics<parallel>], iteration_bounds = array<i64: 2>, scalar_prefetch = 0 : i64, scratch_operands = 0 : i64, tpu.core_type = #tpu.core_type<tc>, window_params = [{transform_indices = @transform_0, window_bounds = array<i64: 1, 8, 1024>}, {pipeline_mode = #tpu.pipeline_mode<synchronous>, transform_indices = @transform_1, window_bounds = array<i64: 1024, 128>}, {pipeline_mode = #tpu.pipeline_mode<synchronous>, transform_indices = @transform_2, window_bounds = array<i64: 128, 128>}, {pipeline_mode = #tpu.pipeline_mode<synchronous>, transform_indices = @transform_3, window_bounds = array<i64: 1, 128>}, {pipeline_mode = #tpu.pipeline_mode<synchronous>, transform_indices = @transform_4, window_bounds = array<i64: 1, 128>}, {pipeline_mode = #tpu.pipeline_mode<synchronous>, transform_indices = @transform_5, window_bounds = array<i64: 128, 128>}, {pipeline_mode = #tpu.pipeline_mode<synchronous>, transform_indices = @transform_6, window_bounds = array<i64: 1, 128>}, {pipeline_mode = #tpu.pipeline_mode<synchronous>, transform_indices = @transform_7, window_bounds = array<i64: 1, 128>}, {pipeline_mode = #tpu.pipeline_mode<synchronous>, transform_indices = @transform_8, window_bounds = array<i64: 128, 256>}, {pipeline_mode = #tpu.pipeline_mode<synchronous>, transform_indices = @transform_9, window_bounds = array<i64: 1, 256>}, {pipeline_mode = #tpu.pipeline_mode<synchronous>, transform_indices = @transform_10, window_bounds = array<i64: 256, 128>}, {pipeline_mode = #tpu.pipeline_mode<synchronous>, transform_indices = @transform_11, window_bounds = array<i64: 1, 128>}, {pipeline_mode = #tpu.pipeline_mode<synchronous>, transform_indices = @transform_12, window_bounds = array<i64: 1, 128>}, {pipeline_mode = #tpu.pipeline_mode<synchronous>, transform_indices = @transform_13, window_bounds = array<i64: 128, 256>}, {pipeline_mode = #tpu.pipeline_mode<synchronous>, transform_indices = @transform_14, window_bounds = array<i64: 1, 256>}, {transform_indices = @transform_15, window_bounds = array<i64: 1, 8, 256>}, {transform_indices = @transform_16, window_bounds = array<i64: 1, 8, 256>}]} {
    %c0 = arith.constant 0 : index
    %c0_0 = arith.constant 0 : index
    %c0_1 = arith.constant 0 : index
    %0 = vector.load %arg1[%c0, %c0_0, %c0_1] : memref<1x8x1024xbf16, #tpu.memory_space<vmem>>, vector<1x8x1024xbf16>
    %1 = vector.shape_cast %0 : vector<1x8x1024xbf16> to vector<8x1024xbf16>
    %c0_2 = arith.constant 0 : index
    %c0_3 = arith.constant 0 : index
    %2 = vector.load %arg2[%c0_2, %c0_3] : memref<1024x128xbf16, #tpu.memory_space<vmem>>, vector<1024x128xbf16>
    %cst = arith.constant dense<0.000000e+00> : vector<8x128xf32>
    %3 = tpu.matmul %1, %2, %cst {dimension_numbers = #tpu.dot_dimension_numbers<[1], [0], [0], [1], [0, 0, 1, 1], [], []>} : vector<8x1024xbf16>, vector<1024x128xbf16>, vector<8x128xf32> -> vector<8x128xf32>
    %4 = arith.truncf %3 : vector<8x128xf32> to vector<8x128xbf16>
    %c0_4 = arith.constant 0 : index
    %c0_5 = arith.constant 0 : index
    %5 = vector.load %arg3[%c0_4, %c0_5] : memref<128x128xbf16, #tpu.memory_space<vmem>>, vector<128x128xbf16>
    %cst_6 = arith.constant dense<0.000000e+00> : vector<8x128xf32>
    %6 = tpu.matmul %4, %5, %cst_6 {dimension_numbers = #tpu.dot_dimension_numbers<[1], [0], [0], [1], [0, 0, 1, 1], [], []>} : vector<8x128xbf16>, vector<128x128xbf16>, vector<8x128xf32> -> vector<8x128xf32>
    %c0_7 = arith.constant 0 : index
    %c0_8 = arith.constant 0 : index
    %7 = vector.load %arg4[%c0_7, %c0_8] : memref<1x128xf32, #tpu.memory_space<vmem>>, vector<1x128xf32>
    %c0_9 = arith.constant 0 : index
    %c0_10 = arith.constant 0 : index
    %8 = vector.load %arg5[%c0_9, %c0_10] : memref<1x128xf32, #tpu.memory_space<vmem>>, vector<1x128xf32>
    %cst_11 = arith.constant dense<0.000000e+00> : vector<128xf32>
    %9 = vector.multi_reduction <add>, %6, %cst_11 [0] : vector<8x128xf32> to vector<128xf32>
    %10 = vector.shape_cast %9 : vector<128xf32> to vector<1x128xf32>
    %11 = arith.mulf %6, %6 : vector<8x128xf32>
    %cst_12 = arith.constant dense<0.000000e+00> : vector<128xf32>
    %12 = vector.multi_reduction <add>, %11, %cst_12 [0] : vector<8x128xf32> to vector<128xf32>
    %13 = vector.shape_cast %12 : vector<128xf32> to vector<1x128xf32>
    %cst_13 = arith.constant 1.250000e-01 : f32
    %14 = vector.broadcast %cst_13 : f32 to vector<1x128xf32>
    %15 = arith.mulf %10, %14 : vector<1x128xf32>
    %cst_14 = arith.constant 1.250000e-01 : f32
    %16 = vector.broadcast %cst_14 : f32 to vector<1x128xf32>
    %17 = arith.mulf %13, %16 : vector<1x128xf32>
    %18 = arith.mulf %15, %15 : vector<1x128xf32>
    %19 = arith.subf %17, %18 : vector<1x128xf32>
    %cst_15 = arith.constant 0.000000e+00 : f32
    %20 = vector.broadcast %cst_15 : f32 to vector<1x128xf32>
    %21 = arith.maximumf %19, %20 : vector<1x128xf32>
    %22 = vector.broadcast %15 : vector<1x128xf32> to vector<8x128xf32>
    %23 = arith.subf %6, %22 : vector<8x128xf32>
    %cst_16 = arith.constant 9.99999974E-6 : f32
    %24 = vector.broadcast %cst_16 : f32 to vector<1x128xf32>
    %25 = arith.addf %21, %24 : vector<1x128xf32>
    %26 = math.rsqrt %25 : vector<1x128xf32>
    %27 = vector.broadcast %26 : vector<1x128xf32> to vector<8x128xf32>
    %28 = arith.mulf %23, %27 : vector<8x128xf32>
    %29 = vector.broadcast %7 : vector<1x128xf32> to vector<8x128xf32>
    %30 = arith.mulf %28, %29 : vector<8x128xf32>
    %31 = vector.broadcast %8 : vector<1x128xf32> to vector<8x128xf32>
    %32 = arith.addf %30, %31 : vector<8x128xf32>
    %cst_17 = arith.constant 0.000000e+00 : f32
    %33 = vector.broadcast %cst_17 : f32 to vector<8x128xf32>
    %34 = arith.maximumf %32, %33 : vector<8x128xf32>
    %35 = arith.truncf %34 : vector<8x128xf32> to vector<8x128xbf16>
    %c0_18 = arith.constant 0 : index
    %c0_19 = arith.constant 0 : index
    %36 = vector.load %arg6[%c0_18, %c0_19] : memref<128x128xbf16, #tpu.memory_space<vmem>>, vector<128x128xbf16>
    %cst_20 = arith.constant dense<0.000000e+00> : vector<8x128xf32>
    %37 = tpu.matmul %35, %36, %cst_20 {dimension_numbers = #tpu.dot_dimension_numbers<[1], [0], [0], [1], [0, 0, 1, 1], [], []>} : vector<8x128xbf16>, vector<128x128xbf16>, vector<8x128xf32> -> vector<8x128xf32>
    %c0_21 = arith.constant 0 : index
    %c0_22 = arith.constant 0 : index
    %38 = vector.load %arg7[%c0_21, %c0_22] : memref<1x128xf32, #tpu.memory_space<vmem>>, vector<1x128xf32>
    %c0_23 = arith.constant 0 : index
    %c0_24 = arith.constant 0 : index
    %39 = vector.load %arg8[%c0_23, %c0_24] : memref<1x128xf32, #tpu.memory_space<vmem>>, vector<1x128xf32>
    %cst_25 = arith.constant dense<0.000000e+00> : vector<128xf32>
    %40 = vector.multi_reduction <add>, %37, %cst_25 [0] : vector<8x128xf32> to vector<128xf32>
    %41 = vector.shape_cast %40 : vector<128xf32> to vector<1x128xf32>
    %42 = arith.mulf %37, %37 : vector<8x128xf32>
    %cst_26 = arith.constant dense<0.000000e+00> : vector<128xf32>
    %43 = vector.multi_reduction <add>, %42, %cst_26 [0] : vector<8x128xf32> to vector<128xf32>
    %44 = vector.shape_cast %43 : vector<128xf32> to vector<1x128xf32>
    %cst_27 = arith.constant 1.250000e-01 : f32
    %45 = vector.broadcast %cst_27 : f32 to vector<1x128xf32>
    %46 = arith.mulf %41, %45 : vector<1x128xf32>
    %cst_28 = arith.constant 1.250000e-01 : f32
    %47 = vector.broadcast %cst_28 : f32 to vector<1x128xf32>
    %48 = arith.mulf %44, %47 : vector<1x128xf32>
    %49 = arith.mulf %46, %46 : vector<1x128xf32>
    %50 = arith.subf %48, %49 : vector<1x128xf32>
    %cst_29 = arith.constant 0.000000e+00 : f32
    %51 = vector.broadcast %cst_29 : f32 to vector<1x128xf32>
    %52 = arith.maximumf %50, %51 : vector<1x128xf32>
    %53 = vector.broadcast %46 : vector<1x128xf32> to vector<8x128xf32>
    %54 = arith.subf %37, %53 : vector<8x128xf32>
    %cst_30 = arith.constant 9.99999974E-6 : f32
    %55 = vector.broadcast %cst_30 : f32 to vector<1x128xf32>
    %56 = arith.addf %52, %55 : vector<1x128xf32>
    %57 = math.rsqrt %56 : vector<1x128xf32>
    %58 = vector.broadcast %57 : vector<1x128xf32> to vector<8x128xf32>
    %59 = arith.mulf %54, %58 : vector<8x128xf32>
    %60 = vector.broadcast %38 : vector<1x128xf32> to vector<8x128xf32>
    %61 = arith.mulf %59, %60 : vector<8x128xf32>
    %62 = vector.broadcast %39 : vector<1x128xf32> to vector<8x128xf32>
    %63 = arith.addf %61, %62 : vector<8x128xf32>
    %cst_31 = arith.constant 0.000000e+00 : f32
    %64 = vector.broadcast %cst_31 : f32 to vector<8x128xf32>
    %65 = arith.maximumf %63, %64 : vector<8x128xf32>
    %66 = arith.truncf %65 : vector<8x128xf32> to vector<8x128xbf16>
    %c0_32 = arith.constant 0 : index
    %c0_33 = arith.constant 0 : index
    %67 = vector.load %arg9[%c0_32, %c0_33] : memref<128x256xbf16, #tpu.memory_space<vmem>>, vector<128x256xbf16>
    %cst_34 = arith.constant dense<0.000000e+00> : vector<8x256xf32>
    %68 = tpu.matmul %66, %67, %cst_34 {dimension_numbers = #tpu.dot_dimension_numbers<[1], [0], [0], [1], [0, 0, 1, 1], [], []>} : vector<8x128xbf16>, vector<128x256xbf16>, vector<8x256xf32> -> vector<8x256xf32>
    %c0_35 = arith.constant 0 : index
    %c0_36 = arith.constant 0 : index
    %69 = vector.load %arg10[%c0_35, %c0_36] : memref<1x256xf32, #tpu.memory_space<vmem>>, vector<1x256xf32>
    %70 = vector.broadcast %69 : vector<1x256xf32> to vector<8x256xf32>
    %71 = arith.addf %68, %70 : vector<8x256xf32>
    %cst_37 = arith.constant dense<0.000000e+00> : vector<256xf32>
    %72 = vector.multi_reduction <add>, %71, %cst_37 [0] : vector<8x256xf32> to vector<256xf32>
    %73 = vector.shape_cast %72 : vector<256xf32> to vector<1x256xf32>
    %74 = arith.mulf %71, %71 : vector<8x256xf32>
    %cst_38 = arith.constant dense<0.000000e+00> : vector<256xf32>
    %75 = vector.multi_reduction <add>, %74, %cst_38 [0] : vector<8x256xf32> to vector<256xf32>
    %76 = vector.shape_cast %75 : vector<256xf32> to vector<1x256xf32>
    %cst_39 = arith.constant 1.250000e-01 : f32
    %77 = vector.broadcast %cst_39 : f32 to vector<1x256xf32>
    %78 = arith.mulf %73, %77 : vector<1x256xf32>
    %cst_40 = arith.constant 1.250000e-01 : f32
    %79 = vector.broadcast %cst_40 : f32 to vector<1x256xf32>
    %80 = arith.mulf %76, %79 : vector<1x256xf32>
    %81 = arith.mulf %78, %78 : vector<1x256xf32>
    %82 = arith.subf %80, %81 : vector<1x256xf32>
    %cst_41 = arith.constant 0.000000e+00 : f32
    %83 = vector.broadcast %cst_41 : f32 to vector<1x256xf32>
    %84 = arith.maximumf %82, %83 : vector<1x256xf32>
    %85 = vector.broadcast %78 : vector<1x256xf32> to vector<8x256xf32>
    %86 = arith.subf %71, %85 : vector<8x256xf32>
    %cst_42 = arith.constant 9.99999974E-6 : f32
    %87 = vector.broadcast %cst_42 : f32 to vector<1x256xf32>
    %88 = arith.addf %84, %87 : vector<1x256xf32>
    %89 = math.rsqrt %88 : vector<1x256xf32>
    %90 = vector.broadcast %89 : vector<1x256xf32> to vector<8x256xf32>
    %91 = arith.mulf %86, %90 : vector<8x256xf32>
    %c0_43 = arith.constant 0 : index
    %c0_44 = arith.constant 0 : index
    %c0_45 = arith.constant 0 : index
    %92 = vector.load %arg17[%c0_43, %c0_44, %c0_45] : memref<1x8x256xf32, #tpu.memory_space<vmem>>, vector<1x8x256xf32>
    %93 = vector.shape_cast %92 : vector<1x8x256xf32> to vector<8x256xf32>
    %94 = vector.shape_cast %91 : vector<8x256xf32> to vector<1x8x256xf32>
    tpu.vector_store %arg17[%c0_43, %c0_44, %c0_45], %94 {strides = array<i32>} : memref<1x8x256xf32, #tpu.memory_space<vmem>>, vector<1x8x256xf32>,
    %95 = arith.truncf %91 : vector<8x256xf32> to vector<8x256xbf16>
    %c0_46 = arith.constant 0 : index
    %c0_47 = arith.constant 0 : index
    %96 = vector.load %arg11[%c0_46, %c0_47] : memref<256x128xbf16, #tpu.memory_space<vmem>>, vector<256x128xbf16>
    %cst_48 = arith.constant dense<0.000000e+00> : vector<8x128xf32>
    %97 = tpu.matmul %95, %96, %cst_48 {dimension_numbers = #tpu.dot_dimension_numbers<[1], [0], [0], [1], [0, 0, 1, 1], [], []>} : vector<8x256xbf16>, vector<256x128xbf16>, vector<8x128xf32> -> vector<8x128xf32>
    %c0_49 = arith.constant 0 : index
    %c0_50 = arith.constant 0 : index
    %98 = vector.load %arg12[%c0_49, %c0_50] : memref<1x128xf32, #tpu.memory_space<vmem>>, vector<1x128xf32>
    %c0_51 = arith.constant 0 : index
    %c0_52 = arith.constant 0 : index
    %99 = vector.load %arg13[%c0_51, %c0_52] : memref<1x128xf32, #tpu.memory_space<vmem>>, vector<1x128xf32>
    %cst_53 = arith.constant dense<0.000000e+00> : vector<128xf32>
    %100 = vector.multi_reduction <add>, %97, %cst_53 [0] : vector<8x128xf32> to vector<128xf32>
    %101 = vector.shape_cast %100 : vector<128xf32> to vector<1x128xf32>
    %102 = arith.mulf %97, %97 : vector<8x128xf32>
    %cst_54 = arith.constant dense<0.000000e+00> : vector<128xf32>
    %103 = vector.multi_reduction <add>, %102, %cst_54 [0] : vector<8x128xf32> to vector<128xf32>
    %104 = vector.shape_cast %103 : vector<128xf32> to vector<1x128xf32>
    %cst_55 = arith.constant 1.250000e-01 : f32
    %105 = vector.broadcast %cst_55 : f32 to vector<1x128xf32>
    %106 = arith.mulf %101, %105 : vector<1x128xf32>
    %cst_56 = arith.constant 1.250000e-01 : f32
    %107 = vector.broadcast %cst_56 : f32 to vector<1x128xf32>
    %108 = arith.mulf %104, %107 : vector<1x128xf32>
    %109 = arith.mulf %106, %106 : vector<1x128xf32>
    %110 = arith.subf %108, %109 : vector<1x128xf32>
    %cst_57 = arith.constant 0.000000e+00 : f32
    %111 = vector.broadcast %cst_57 : f32 to vector<1x128xf32>
    %112 = arith.maximumf %110, %111 : vector<1x128xf32>
    %113 = vector.broadcast %106 : vector<1x128xf32> to vector<8x128xf32>
    %114 = arith.subf %97, %113 : vector<8x128xf32>
    %cst_58 = arith.constant 9.99999974E-6 : f32
    %115 = vector.broadcast %cst_58 : f32 to vector<1x128xf32>
    %116 = arith.addf %112, %115 : vector<1x128xf32>
    %117 = math.rsqrt %116 : vector<1x128xf32>
    %118 = vector.broadcast %117 : vector<1x128xf32> to vector<8x128xf32>
    %119 = arith.mulf %114, %118 : vector<8x128xf32>
    %120 = vector.broadcast %98 : vector<1x128xf32> to vector<8x128xf32>
    %121 = arith.mulf %119, %120 : vector<8x128xf32>
    %122 = vector.broadcast %99 : vector<1x128xf32> to vector<8x128xf32>
    %123 = arith.addf %121, %122 : vector<8x128xf32>
    %cst_59 = arith.constant 0.000000e+00 : f32
    %124 = vector.broadcast %cst_59 : f32 to vector<8x128xf32>
    %125 = arith.maximumf %123, %124 : vector<8x128xf32>
    %126 = arith.truncf %125 : vector<8x128xf32> to vector<8x128xbf16>
    %c0_60 = arith.constant 0 : index
    %c0_61 = arith.constant 0 : index
    %127 = vector.load %arg14[%c0_60, %c0_61] : memref<128x256xbf16, #tpu.memory_space<vmem>>, vector<128x256xbf16>
    %cst_62 = arith.constant dense<0.000000e+00> : vector<8x256xf32>
    %128 = tpu.matmul %126, %127, %cst_62 {dimension_numbers = #tpu.dot_dimension_numbers<[1], [0], [0], [1], [0, 0, 1, 1], [], []>} : vector<8x128xbf16>, vector<128x256xbf16>, vector<8x256xf32> -> vector<8x256xf32>
    %c0_63 = arith.constant 0 : index
    %c0_64 = arith.constant 0 : index
    %129 = vector.load %arg15[%c0_63, %c0_64] : memref<1x256xf32, #tpu.memory_space<vmem>>, vector<1x256xf32>
    %130 = vector.broadcast %129 : vector<1x256xf32> to vector<8x256xf32>
    %131 = arith.addf %128, %130 : vector<8x256xf32>
    %c0_65 = arith.constant 0 : index
    %c0_66 = arith.constant 0 : index
    %c0_67 = arith.constant 0 : index
    %132 = vector.load %arg16[%c0_65, %c0_66, %c0_67] : memref<1x8x256xf32, #tpu.memory_space<vmem>>, vector<1x8x256xf32>
    %133 = vector.shape_cast %132 : vector<1x8x256xf32> to vector<8x256xf32>
    %134 = vector.shape_cast %131 : vector<8x256xf32> to vector<1x8x256xf32>
    tpu.vector_store %arg16[%c0_65, %c0_66, %c0_67], %134 {strides = array<i32>} : memref<1x8x256xf32, #tpu.memory_space<vmem>>, vector<1x8x256xf32>,
    return
  }
  func.func @transform_0(%arg0: i32) -> (i32, i32, i32) {
    %c0_i32 = arith.constant 0 : i32
    %c0_i32_0 = arith.constant 0 : i32
    %c0_i32_1 = arith.constant 0 : i32
    return %arg0, %c0_i32, %c0_i32_0 : i32, i32, i32
  }
  func.func @transform_1(%arg0: i32) -> (i32, i32) {
    %c0_i32 = arith.constant 0 : i32
    %c0_i32_0 = arith.constant 0 : i32
    %c0_i32_1 = arith.constant 0 : i32
    return %c0_i32, %c0_i32_0 : i32, i32
  }
  func.func @transform_2(%arg0: i32) -> (i32, i32) {
    %c0_i32 = arith.constant 0 : i32
    %c0_i32_0 = arith.constant 0 : i32
    %c0_i32_1 = arith.constant 0 : i32
    return %c0_i32, %c0_i32_0 : i32, i32
  }
  func.func @transform_3(%arg0: i32) -> (i32, i32) {
    %c0_i32 = arith.constant 0 : i32
    %c0_i32_0 = arith.constant 0 : i32
    %c0_i32_1 = arith.constant 0 : i32
    return %c0_i32, %c0_i32_0 : i32, i32
  }
  func.func @transform_4(%arg0: i32) -> (i32, i32) {
    %c0_i32 = arith.constant 0 : i32
    %c0_i32_0 = arith.constant 0 : i32
    %c0_i32_1 = arith.constant 0 : i32
    return %c0_i32, %c0_i32_0 : i32, i32
  }
  func.func @transform_5(%arg0: i32) -> (i32, i32) {
    %c0_i32 = arith.constant 0 : i32
    %c0_i32_0 = arith.constant 0 : i32
    %c0_i32_1 = arith.constant 0 : i32
    return %c0_i32, %c0_i32_0 : i32, i32
  }
  func.func @transform_6(%arg0: i32) -> (i32, i32) {
    %c0_i32 = arith.constant 0 : i32
    %c0_i32_0 = arith.constant 0 : i32
    %c0_i32_1 = arith.constant 0 : i32
    return %c0_i32, %c0_i32_0 : i32, i32
  }
  func.func @transform_7(%arg0: i32) -> (i32, i32) {
    %c0_i32 = arith.constant 0 : i32
    %c0_i32_0 = arith.constant 0 : i32
    %c0_i32_1 = arith.constant 0 : i32
    return %c0_i32, %c0_i32_0 : i32, i32
  }
  func.func @transform_8(%arg0: i32) -> (i32, i32) {
    %c0_i32 = arith.constant 0 : i32
    %c0_i32_0 = arith.constant 0 : i32
    %c0_i32_1 = arith.constant 0 : i32
    return %c0_i32, %c0_i32_0 : i32, i32
  }
  func.func @transform_9(%arg0: i32) -> (i32, i32) {
    %c0_i32 = arith.constant 0 : i32
    %c0_i32_0 = arith.constant 0 : i32
    %c0_i32_1 = arith.constant 0 : i32
    return %c0_i32, %c0_i32_0 : i32, i32
  }
  func.func @transform_10(%arg0: i32) -> (i32, i32) {
    %c0_i32 = arith.constant 0 : i32
    %c0_i32_0 = arith.constant 0 : i32
    %c0_i32_1 = arith.constant 0 : i32
    return %c0_i32, %c0_i32_0 : i32, i32
  }
  func.func @transform_11(%arg0: i32) -> (i32, i32) {
    %c0_i32 = arith.constant 0 : i32
    %c0_i32_0 = arith.constant 0 : i32
    %c0_i32_1 = arith.constant 0 : i32
    return %c0_i32, %c0_i32_0 : i32, i32
  }
  func.func @transform_12(%arg0: i32) -> (i32, i32) {
    %c0_i32 = arith.constant 0 : i32
    %c0_i32_0 = arith.constant 0 : i32
    %c0_i32_1 = arith.constant 0 : i32
    return %c0_i32, %c0_i32_0 : i32, i32
  }
  func.func @transform_13(%arg0: i32) -> (i32, i32) {
    %c0_i32 = arith.constant 0 : i32
    %c0_i32_0 = arith.constant 0 : i32
    %c0_i32_1 = arith.constant 0 : i32
    return %c0_i32, %c0_i32_0 : i32, i32
  }
  func.func @transform_14(%arg0: i32) -> (i32, i32) {
    %c0_i32 = arith.constant 0 : i32
    %c0_i32_0 = arith.constant 0 : i32
    %c0_i32_1 = arith.constant 0 : i32
    return %c0_i32, %c0_i32_0 : i32, i32
  }
  func.func @transform_15(%arg0: i32) -> (i32, i32, i32) {
    %c0_i32 = arith.constant 0 : i32
    %c0_i32_0 = arith.constant 0 : i32
    %c0_i32_1 = arith.constant 0 : i32
    return %arg0, %c0_i32, %c0_i32_0 : i32, i32, i32
  }
  func.func @transform_16(%arg0: i32) -> (i32, i32, i32) {
    %c0_i32 = arith.constant 0 : i32
    %c0_i32_0 = arith.constant 0 : i32
    %c0_i32_1 = arith.constant 0 : i32
    return %arg0, %c0_i32, %c0_i32_0 : i32, i32, i32
  }
}

</mosaic_0001>

<llo_original>
// kernel: simsiam_forward.1
$region0: #{simsiam_forward.1}
  #allocation0 [shape = 'u32[]', space=smem, size = 0x4, offset = 0x4, fixed_abs, tag = 'smem constant byte address 0x4 - core index']
  #allocation1 [shape = 'u32[144,128]{1,0:T(1,128)}', space=vmem, size = 0x12000, scoped, tag = 'internal scratch']
  %s0 = inlined_call_operand.vmem [shape: bf16[2,8,1024], index: 0, kind: input, shape index: {}]
  %s1 = inlined_call_operand.vmem [shape: bf16[1024,128], index: 1, kind: input, shape index: {}]
  %s2 = inlined_call_operand.vmem [shape: bf16[128,128], index: 2, kind: input, shape index: {}]
  %s3 = inlined_call_operand.vmem [shape: f32[1,128], index: 3, kind: input, shape index: {}]
  %s4 = inlined_call_operand.vmem [shape: f32[1,128], index: 4, kind: input, shape index: {}]
  %s5 = inlined_call_operand.vmem [shape: bf16[128,128], index: 5, kind: input, shape index: {}]
  %s6 = inlined_call_operand.vmem [shape: f32[1,128], index: 6, kind: input, shape index: {}]
  %s7 = inlined_call_operand.vmem [shape: f32[1,128], index: 7, kind: input, shape index: {}]
  %s8 = inlined_call_operand.vmem [shape: bf16[128,256], index: 8, kind: input, shape index: {}]
  %s9 = inlined_call_operand.vmem [shape: f32[1,256], index: 9, kind: input, shape index: {}]
  %s10 = inlined_call_operand.vmem [shape: bf16[256,128], index: 10, kind: input, shape index: {}]
  %s11 = inlined_call_operand.vmem [shape: f32[1,128], index: 11, kind: input, shape index: {}]
  %s12 = inlined_call_operand.vmem [shape: f32[1,128], index: 12, kind: input, shape index: {}]
  %s13 = inlined_call_operand.vmem [shape: bf16[128,256], index: 13, kind: input, shape index: {}]
  %s14 = inlined_call_operand.vmem [shape: f32[1,256], index: 14, kind: input, shape index: {}]
  %s15 = inlined_call_operand.vmem [shape: f32[2,8,256], index: 15, kind: output, shape index: {0}]
  %s16 = inlined_call_operand.vmem [shape: f32[2,8,256], index: 16, kind: output, shape index: {1}]
  %17 = xla_tuple %s15, %s16
  %s18 = sld [smem:[#allocation0]]
  $region101: #{simsiam_forward.1} parent=0
    _
  %s20 = ssub.s32 1, %s18
  %s21 = scalar_select 0, %s20, %s18
  loop: start=0, step=1, limit=4
  $region2: #{simsiam_forward.1} parent=0 // loop_pre_header
    _
  $region3: #{simsiam_forward.1} parent=0 // loop_header
    %s23 = sphi 0, %s27
    %p24 = scmp.ge.s32.totalorder %s23, 4
    %s33 = sphi 0, %s35
    %s36 = sphi 0, %s33
    %s37 = sphi 0, %s36
    %s53 = sphi 0, %s37
    %s57 = sphi 0, %s57
    %s59 = sphi 0, %s57
    %s60 = sphi 0, %s59
    %s74 = sphi 0, %s60
    %s78 = sphi 0, %s78
    %s80 = sphi 0, %s78
    %s81 = sphi 0, %s80
    %s95 = sphi 0, %s81
    %s99 = sphi 0, %s99
    %s101 = sphi 0, %s99
    %s102 = sphi 0, %s101
    %s116 = sphi 0, %s102
    %s120 = sphi 0, %s120
    %s122 = sphi 0, %s120
    %s123 = sphi 0, %s122
    %s137 = sphi 0, %s123
    %s141 = sphi 0, %s141
    %s143 = sphi 0, %s141
    %s144 = sphi 0, %s143
    %s158 = sphi 0, %s144
    %s162 = sphi 0, %s162
    %s164 = sphi 0, %s162
    %s165 = sphi 0, %s164
    %s179 = sphi 0, %s165
    %s183 = sphi 0, %s183
    %s185 = sphi 0, %s183
    %s186 = sphi 0, %s185
    %s200 = sphi 0, %s186
    %s204 = sphi 0, %s204
    %s206 = sphi 0, %s204
    %s207 = sphi 0, %s206
    %s221 = sphi 0, %s207
    %s225 = sphi 0, %s225
    %s227 = sphi 0, %s225
    %s228 = sphi 0, %s227
    %s242 = sphi 0, %s228
    %s246 = sphi 0, %s246
    %s248 = sphi 0, %s246
    %s249 = sphi 0, %s248
    %s263 = sphi 0, %s249
    %s267 = sphi 0, %s267
    %s269 = sphi 0, %s267
    %s270 = sphi 0, %s269
    %s284 = sphi 0, %s270
    %s288 = sphi 0, %s288
    %s290 = sphi 0, %s288
    %s291 = sphi 0, %s290
    %s305 = sphi 0, %s291
    %s309 = sphi 0, %s309
    %s311 = sphi 0, %s309
    %s312 = sphi 0, %s311
    %s326 = sphi 0, %s312
    %s330 = sphi 0, %s330
    %s332 = sphi 0, %s330
    %s333 = sphi 0, %s332
    %s347 = sphi 0, %s333
    %s353 = sphi 0, %s355
    %s356 = sphi 0, %s353
    %s357 = sphi 0, %s356
    %s373 = sphi 0, %s357
    %s379 = sphi 0, %s381
    %s382 = sphi 0, %s379
    %s383 = sphi 0, %s382
    %s399 = sphi 0, %s383
  $region4: #{simsiam_forward.1} parent=0 // loop_header_branch
    %26 = sbr.rel (%p24) target = $region8
  $region5: #{simsiam_forward.1} parent=0 // loop_body
    %s28 = ssub.s32 %s23, 1
    %s29 = ssub.s32 %s23, 2
    %s30 = sadd.s32 %s23, 1
    %s31 = ssub.s32 %s23, %s30
    %p32 = scmp.eq.s32.totalorder %s31, 0
    %s34 = sadd.s32 %s33, 1
    %s35 = scalar_select %p32, %s33, %s34
    %p38 = pneg %p32
    %p39 = scmp.eq.s32.totalorder %s23, 1
    %p40 = por %p38, %p39
    %p41 = scmp.ne.s32.totalorder %s33, %s36
    %p42 = scmp.eq.s32.totalorder %s23, 0
    %p43 = por %p41, %p42
    %p44 = scmp.ne.s32.totalorder %s33, %s36
    %p45 = scmp.eq.s32.totalorder %s28, 1
    %p46 = por %p44, %p45
    %p47 = scmp.ne.s32.totalorder %s36, %s37
    %p48 = scmp.eq.s32.totalorder %s28, 0
    %p49 = por %p47, %p48
    %p50 = scmp.ne.s32.totalorder %s36, %s37
    %p51 = scmp.eq.s32.totalorder %s29, 1
    %p52 = por %p50, %p51
    %p54 = scmp.ne.s32.totalorder %s37, %s53
    %p55 = scmp.eq.s32.totalorder %s29, 0
    %p56 = por %p54, %p55
    %s58 = sadd.s32 %s57, 1
    %p61 = scmp.eq.s32.totalorder %s23, 1
    %p62 = scmp.ne.s32.totalorder %s57, %s59
    %p63 = scmp.eq.s32.totalorder %s23, 0
    %p64 = por %p62, %p63
    %p65 = scmp.ne.s32.totalorder %s57, %s59
    %p66 = scmp.eq.s32.totalorder %s28, 1
    %p67 = por %p65, %p66
    %p68 = scmp.ne.s32.totalorder %s59, %s60
    %p69 = scmp.eq.s32.totalorder %s28, 0
    %p70 = por %p68, %p69
    %p71 = scmp.ne.s32.totalorder %s59, %s60
    %p72 = scmp.eq.s32.totalorder %s29, 1
    %p73 = por %p71, %p72
    %p75 = scmp.ne.s32.totalorder %s60, %s74
    %p76 = scmp.eq.s32.totalorder %s29, 0
    %p77 = por %p75, %p76
    %s79 = sadd.s32 %s78, 1
    %p82 = scmp.eq.s32.totalorder %s23, 1
    %p83 = scmp.ne.s32.totalorder %s78, %s80
    %p84 = scmp.eq.s32.totalorder %s23, 0
    %p85 = por %p83, %p84
    %p86 = scmp.ne.s32.totalorder %s78, %s80
    %p87 = scmp.eq.s32.totalorder %s28, 1
    %p88 = por %p86, %p87
    %p89 = scmp.ne.s32.totalorder %s80, %s81
    %p90 = scmp.eq.s32.totalorder %s28, 0
    %p91 = por %p89, %p90
    %p92 = scmp.ne.s32.totalorder %s80, %s81
    %p93 = scmp.eq.s32.totalorder %s29, 1
    %p94 = por %p92, %p93
    %p96 = scmp.ne.s32.totalorder %s81, %s95
    %p97 = scmp.eq.s32.totalorder %s29, 0
    %p98 = por %p96, %p97
    %s100 = sadd.s32 %s99, 1
    %p103 = scmp.eq.s32.totalorder %s23, 1
    %p104 = scmp.ne.s32.totalorder %s99, %s101
    %p105 = scmp.eq.s32.totalorder %s23, 0
    %p106 = por %p104, %p105
    %p107 = scmp.ne.s32.totalorder %s99, %s101
    %p108 = scmp.eq.s32.totalorder %s28, 1
    %p109 = por %p107, %p108
    %p110 = scmp.ne.s32.totalorder %s101, %s102
    %p111 = scmp.eq.s32.totalorder %s28, 0
    %p112 = por %p110, %p111
    %p113 = scmp.ne.s32.totalorder %s101, %s102
    %p114 = scmp.eq.s32.totalorder %s29, 1
    %p115 = por %p113, %p114
    %p117 = scmp.ne.s32.totalorder %s102, %s116
    %p118 = scmp.eq.s32.totalorder %s29, 0
    %p119 = por %p117, %p118
    %s121 = sadd.s32 %s120, 1
    %p124 = scmp.eq.s32.totalorder %s23, 1
    %p125 = scmp.ne.s32.totalorder %s120, %s122
    %p126 = scmp.eq.s32.totalorder %s23, 0
    %p127 = por %p125, %p126
    %p128 = scmp.ne.s32.totalorder %s120, %s122
    %p129 = scmp.eq.s32.totalorder %s28, 1
    %p130 = por %p128, %p129
    %p131 = scmp.ne.s32.totalorder %s122, %s123
    %p132 = scmp.eq.s32.totalorder %s28, 0
    %p133 = por %p131, %p132
    %p134 = scmp.ne.s32.totalorder %s122, %s123
    %p135 = scmp.eq.s32.totalorder %s29, 1
    %p136 = por %p134, %p135
    %p138 = scmp.ne.s32.totalorder %s123, %s137
    %p139 = scmp.eq.s32.totalorder %s29, 0
    %p140 = por %p138, %p139
    %s142 = sadd.s32 %s141, 1
    %p145 = scmp.eq.s32.totalorder %s23, 1
    %p146 = scmp.ne.s32.totalorder %s141, %s143
    %p147 = scmp.eq.s32.totalorder %s23, 0
    %p148 = por %p146, %p147
    %p149 = scmp.ne.s32.totalorder %s141, %s143
    %p150 = scmp.eq.s32.totalorder %s28, 1
    %p151 = por %p149, %p150
    %p152 = scmp.ne.s32.totalorder %s143, %s144
    %p153 = scmp.eq.s32.totalorder %s28, 0
    %p154 = por %p152, %p153
    %p155 = scmp.ne.s32.totalorder %s143, %s144
    %p156 = scmp.eq.s32.totalorder %s29, 1
    %p157 = por %p155, %p156
    %p159 = scmp.ne.s32.totalorder %s144, %s158
    %p160 = scmp.eq.s32.totalorder %s29, 0
    %p161 = por %p159, %p160
    %s163 = sadd.s32 %s162, 1
    %p166 = scmp.eq.s32.totalorder %s23, 1
    %p167 = scmp.ne.s32.totalorder %s162, %s164
    %p168 = scmp.eq.s32.totalorder %s23, 0
    %p169 = por %p167, %p168
    %p170 = scmp.ne.s32.totalorder %s162, %s164
    %p171 = scmp.eq.s32.totalorder %s28, 1
    %p172 = por %p170, %p171
    %p173 = scmp.ne.s32.totalorder %s164, %s165
    %p174 = scmp.eq.s32.totalorder %s28, 0
    %p175 = por %p173, %p174
    %p176 = scmp.ne.s32.totalorder %s164, %s165
    %p177 = scmp.eq.s32.totalorder %s29, 1
    %p178 = por %p176, %p177
    %p180 = scmp.ne.s32.totalorder %s165, %s179
    %p181 = scmp.eq.s32.totalorder %s29, 0
    %p182 = por %p180, %p181
    %s184 = sadd.s32 %s183, 1
    %p187 = scmp.eq.s32.totalorder %s23, 1
    %p188 = scmp.ne.s32.totalorder %s183, %s185
    %p189 = scmp.eq.s32.totalorder %s23, 0
    %p190 = por %p188, %p189
    %p191 = scmp.ne.s32.totalorder %s183, %s185
    %p192 = scmp.eq.s32.totalorder %s28, 1
    %p193 = por %p191, %p192
    %p194 = scmp.ne.s32.totalorder %s185, %s186
    %p195 = scmp.eq.s32.totalorder %s28, 0
    %p196 = por %p194, %p195
    %p197 = scmp.ne.s32.totalorder %s185, %s186
    %p198 = scmp.eq.s32.totalorder %s29, 1
    %p199 = por %p197, %p198
    %p201 = scmp.ne.s32.totalorder %s186, %s200
    %p202 = scmp.eq.s32.totalorder %s29, 0
    %p203 = por %p201, %p202
    %s205 = sadd.s32 %s204, 1
    %p208 = scmp.eq.s32.totalorder %s23, 1
    %p209 = scmp.ne.s32.totalorder %s204, %s206
    %p210 = scmp.eq.s32.totalorder %s23, 0
    %p211 = por %p209, %p210
    %p212 = scmp.ne.s32.totalorder %s204, %s206
    %p213 = scmp.eq.s32.totalorder %s28, 1
    %p214 = por %p212, %p213
    %p215 = scmp.ne.s32.totalorder %s206, %s207
    %p216 = scmp.eq.s32.totalorder %s28, 0
    %p217 = por %p215, %p216
    %p218 = scmp.ne.s32.totalorder %s206, %s207
    %p219 = scmp.eq.s32.totalorder %s29, 1
    %p220 = por %p218, %p219
    %p222 = scmp.ne.s32.totalorder %s207, %s221
    %p223 = scmp.eq.s32.totalorder %s29, 0
    %p224 = por %p222, %p223
    %s226 = sadd.s32 %s225, 1
    %p229 = scmp.eq.s32.totalorder %s23, 1
    %p230 = scmp.ne.s32.totalorder %s225, %s227
    %p231 = scmp.eq.s32.totalorder %s23, 0
    %p232 = por %p230, %p231
    %p233 = scmp.ne.s32.totalorder %s225, %s227
    %p234 = scmp.eq.s32.totalorder %s28, 1
    %p235 = por %p233, %p234
    %p236 = scmp.ne.s32.totalorder %s227, %s228
    %p237 = scmp.eq.s32.totalorder %s28, 0
    %p238 = por %p236, %p237
    %p239 = scmp.ne.s32.totalorder %s227, %s228
    %p240 = scmp.eq.s32.totalorder %s29, 1
    %p241 = por %p239, %p240
    %p243 = scmp.ne.s32.totalorder %s228, %s242
    %p244 = scmp.eq.s32.totalorder %s29, 0
    %p245 = por %p243, %p244
    %s247 = sadd.s32 %s246, 1
    %p250 = scmp.eq.s32.totalorder %s23, 1
    %p251 = scmp.ne.s32.totalorder %s246, %s248
    %p252 = scmp.eq.s32.totalorder %s23, 0
    %p253 = por %p251, %p252
    %p254 = scmp.ne.s32.totalorder %s246, %s248
    %p255 = scmp.eq.s32.totalorder %s28, 1
    %p256 = por %p254, %p255
    %p257 = scmp.ne.s32.totalorder %s248, %s249
    %p258 = scmp.eq.s32.totalorder %s28, 0
    %p259 = por %p257, %p258
    %p260 = scmp.ne.s32.totalorder %s248, %s249
    %p261 = scmp.eq.s32.totalorder %s29, 1
    %p262 = por %p260, %p261
    %p264 = scmp.ne.s32.totalorder %s249, %s263
    %p265 = scmp.eq.s32.totalorder %s29, 0
    %p266 = por %p264, %p265
    %s268 = sadd.s32 %s267, 1
    %p271 = scmp.eq.s32.totalorder %s23, 1
    %p272 = scmp.ne.s32.totalorder %s267, %s269
    %p273 = scmp.eq.s32.totalorder %s23, 0
    %p274 = por %p272, %p273
    %p275 = scmp.ne.s32.totalorder %s267, %s269
    %p276 = scmp.eq.s32.totalorder %s28, 1
    %p277 = por %p275, %p276
    %p278 = scmp.ne.s32.totalorder %s269, %s270
    %p279 = scmp.eq.s32.totalorder %s28, 0
    %p280 = por %p278, %p279
    %p281 = scmp.ne.s32.totalorder %s269, %s270
    %p282 = scmp.eq.s32.totalorder %s29, 1
    %p283 = por %p281, %p282
    %p285 = scmp.ne.s32.totalorder %s270, %s284
    %p286 = scmp.eq.s32.totalorder %s29, 0
    %p287 = por %p285, %p286
    %s289 = sadd.s32 %s288, 1
    %p292 = scmp.eq.s32.totalorder %s23, 1
    %p293 = scmp.ne.s32.totalorder %s288, %s290
    %p294 = scmp.eq.s32.totalorder %s23, 0
    %p295 = por %p293, %p294
    %p296 = scmp.ne.s32.totalorder %s288, %s290
    %p297 = scmp.eq.s32.totalorder %s28, 1
    %p298 = por %p296, %p297
    %p299 = scmp.ne.s32.totalorder %s290, %s291
    %p300 = scmp.eq.s32.totalorder %s28, 0
    %p301 = por %p299, %p300
    %p302 = scmp.ne.s32.totalorder %s290, %s291
    %p303 = scmp.eq.s32.totalorder %s29, 1
    %p304 = por %p302, %p303
    %p306 = scmp.ne.s32.totalorder %s291, %s305
    %p307 = scmp.eq.s32.totalorder %s29, 0
    %p308 = por %p306, %p307
    %s310 = sadd.s32 %s309, 1
    %p313 = scmp.eq.s32.totalorder %s23, 1
    %p314 = scmp.ne.s32.totalorder %s309, %s311
    %p315 = scmp.eq.s32.totalorder %s23, 0
    %p316 = por %p314, %p315
    %p317 = scmp.ne.s32.totalorder %s309, %s311
    %p318 = scmp.eq.s32.totalorder %s28, 1
    %p319 = por %p317, %p318
    %p320 = scmp.ne.s32.totalorder %s311, %s312
    %p321 = scmp.eq.s32.totalorder %s28, 0
    %p322 = por %p320, %p321
    %p323 = scmp.ne.s32.totalorder %s311, %s312
    %p324 = scmp.eq.s32.totalorder %s29, 1
    %p325 = por %p323, %p324
    %p327 = scmp.ne.s32.totalorder %s312, %s326
    %p328 = scmp.eq.s32.totalorder %s29, 0
    %p329 = por %p327, %p328
    %s331 = sadd.s32 %s330, 1
    %p334 = scmp.eq.s32.totalorder %s23, 1
    %p335 = scmp.ne.s32.totalorder %s330, %s332
    %p336 = scmp.eq.s32.totalorder %s23, 0
    %p337 = por %p335, %p336
    %p338 = scmp.ne.s32.totalorder %s330, %s332
    %p339 = scmp.eq.s32.totalorder %s28, 1
    %p340 = por %p338, %p339
    %p341 = scmp.ne.s32.totalorder %s332, %s333
    %p342 = scmp.eq.s32.totalorder %s28, 0
    %p343 = por %p341, %p342
    %p344 = scmp.ne.s32.totalorder %s332, %s333
    %p345 = scmp.eq.s32.totalorder %s29, 1
    %p346 = por %p344, %p345
    %p348 = scmp.ne.s32.totalorder %s333, %s347
    %p349 = scmp.eq.s32.totalorder %s29, 0
    %p350 = por %p348, %p349
    %s351 = ssub.s32 %s23, %s30
    %p352 = scmp.eq.s32.totalorder %s351, 0
    %s354 = sadd.s32 %s353, 1
    %s355 = scalar_select %p352, %s353, %s354
    %p358 = pneg %p352
    %p359 = scmp.eq.s32.totalorder %s23, 1
    %p360 = por %p358, %p359
    %p361 = scmp.ne.s32.totalorder %s353, %s356
    %p362 = scmp.eq.s32.totalorder %s23, 0
    %p363 = por %p361, %p362
    %p364 = scmp.ne.s32.totalorder %s353, %s356
    %p365 = scmp.eq.s32.totalorder %s28, 1
    %p366 = por %p364, %p365
    %p367 = scmp.ne.s32.totalorder %s356, %s357
    %p368 = scmp.eq.s32.totalorder %s28, 0
    %p369 = por %p367, %p368
    %p370 = scmp.ne.s32.totalorder %s356, %s357
    %p371 = scmp.eq.s32.totalorder %s29, 1
    %p372 = por %p370, %p371
    %p374 = scmp.ne.s32.totalorder %s357, %s373
    %p375 = scmp.eq.s32.totalorder %s29, 0
    %p376 = por %p374, %p375
    %s377 = ssub.s32 %s23, %s30
    %p378 = scmp.eq.s32.totalorder %s377, 0
    %s380 = sadd.s32 %s379, 1
    %s381 = scalar_select %p378, %s379, %s380
    %p384 = pneg %p378
    %p385 = scmp.eq.s32.totalorder %s23, 1
    %p386 = por %p384, %p385
    %p387 = scmp.ne.s32.totalorder %s379, %s382
    %p388 = scmp.eq.s32.totalorder %s23, 0
    %p389 = por %p387, %p388
    %p390 = scmp.ne.s32.totalorder %s379, %s382
    %p391 = scmp.eq.s32.totalorder %s28, 1
    %p392 = por %p390, %p391
    %p393 = scmp.ne.s32.totalorder %s382, %s383
    %p394 = scmp.eq.s32.totalorder %s28, 0
    %p395 = por %p393, %p394
    %p396 = scmp.ne.s32.totalorder %s382, %s383
    %p397 = scmp.eq.s32.totalorder %s29, 1
    %p398 = por %p396, %p397
    %p400 = scmp.ne.s32.totalorder %s383, %s399
    %p401 = scmp.eq.s32.totalorder %s29, 0
    %p402 = por %p400, %p401
    %p403 = scmp.le.s32.totalorder 1, %s23
    %p404 = scmp.lt.s32.totalorder %s23, 3
    %p405 = pnand %p403, %p404
    %p406 = pneg %p405
    // Predicated region
    $region9: #{simsiam_forward.1} parent=5 // pred_check
      _
    $region10: #{simsiam_forward.1} parent=5 // pred_check_branch
      %408 = sbr.rel (%p405) target = $region12
    $region11: #{simsiam_forward.1} parent=5 // pred_region
      %s409 = ssub.s32 %s23, 1
      // Predicated region
      $region13: #{simsiam_forward.1} parent=11 // pred_check
        %p410 = pneg %p70
      $region14: #{simsiam_forward.1} parent=11 // pred_check_branch
        %412 = sbr.rel (%p410) target = $region16
      $region15: #{simsiam_forward.1} parent=11 // pred_region
        _
      $region16: #{simsiam_forward.1} parent=11 // pred_fallthru
        _
      // Predicated region
      $region17: #{simsiam_forward.1} parent=11 // pred_check
        %p413 = pneg %p91
      $region18: #{simsiam_forward.1} parent=11 // pred_check_branch
        %415 = sbr.rel (%p413) target = $region20
      $region19: #{simsiam_forward.1} parent=11 // pred_region
        _
      $region20: #{simsiam_forward.1} parent=11 // pred_fallthru
        _
      // Predicated region
      $region21: #{simsiam_forward.1} parent=11 // pred_check
        %p416 = pneg %p112
      $region22: #{simsiam_forward.1} parent=11 // pred_check_branch
        %418 = sbr.rel (%p416) target = $region24
      $region23: #{simsiam_forward.1} parent=11 // pred_region
        _
      $region24: #{simsiam_forward.1} parent=11 // pred_fallthru
        _
      // Predicated region
      $region25: #{simsiam_forward.1} parent=11 // pred_check
        %p419 = pneg %p133
      $region26: #{simsiam_forward.1} parent=11 // pred_check_branch
        %421 = sbr.rel (%p419) target = $region28
      $region27: #{simsiam_forward.1} parent=11 // pred_region
        _
      $region28: #{simsiam_forward.1} parent=11 // pred_fallthru
        _
      // Predicated region
      $region29: #{simsiam_forward.1} parent=11 // pred_check
        %p422 = pneg %p154
      $region30: #{simsiam_forward.1} parent=11 // pred_check_branch
        %424 = sbr.rel (%p422) target = $region32
      $region31: #{simsiam_forward.1} parent=11 // pred_region
        _
      $region32: #{simsiam_forward.1} parent=11 // pred_fallthru
        _
      // Predicated region
      $region33: #{simsiam_forward.1} parent=11 // pred_check
        %p425 = pneg %p175
      $region34: #{simsiam_forward.1} parent=11 // pred_check_branch
        %427 = sbr.rel (%p425) target = $region36
      $region35: #{simsiam_forward.1} parent=11 // pred_region
        _
      $region36: #{simsiam_forward.1} parent=11 // pred_fallthru
        _
      // Predicated region
      $region37: #{simsiam_forward.1} parent=11 // pred_check
        %p428 = pneg %p196
      $region38: #{simsiam_forward.1} parent=11 // pred_check_branch
        %430 = sbr.rel (%p428) target = $region40
      $region39: #{simsiam_forward.1} parent=11 // pred_region
        _
      $region40: #{simsiam_forward.1} parent=11 // pred_fallthru
        _
      // Predicated region
      $region41: #{simsiam_forward.1} parent=11 // pred_check
        %p431 = pneg %p217
      $region42: #{simsiam_forward.1} parent=11 // pred_check_branch
        %433 = sbr.rel (%p431) target = $region44
      $region43: #{simsiam_forward.1} parent=11 // pred_region
        _
      $region44: #{simsiam_forward.1} parent=11 // pred_fallthru
        _
      // Predicated region
      $region45: #{simsiam_forward.1} parent=11 // pred_check
        %p434 = pneg %p238
      $region46: #{simsiam_forward.1} parent=11 // pred_check_branch
        %436 = sbr.rel (%p434) target = $region48
      $region47: #{simsiam_forward.1} parent=11 // pred_region
        _
      $region48: #{simsiam_forward.1} parent=11 // pred_fallthru
        _
      // Predicated region
      $region49: #{simsiam_forward.1} parent=11 // pred_check
        %p437 = pneg %p259
      $region50: #{simsiam_forward.1} parent=11 // pred_check_branch
        %439 = sbr.rel (%p437) target = $region52
      $region51: #{simsiam_forward.1} parent=11 // pred_region
        _
      $region52: #{simsiam_forward.1} parent=11 // pred_fallthru
        _
      // Predicated region
      $region53: #{simsiam_forward.1} parent=11 // pred_check
        %p440 = pneg %p280
      $region54: #{simsiam_forward.1} parent=11 // pred_check_branch
        %442 = sbr.rel (%p440) target = $region56
      $region55: #{simsiam_forward.1} parent=11 // pred_region
        _
      $region56: #{simsiam_forward.1} parent=11 // pred_fallthru
        _
      // Predicated region
      $region57: #{simsiam_forward.1} parent=11 // pred_check
        %p443 = pneg %p301
      $region58: #{simsiam_forward.1} parent=11 // pred_check_branch
        %445 = sbr.rel (%p443) target = $region60
      $region59: #{simsiam_forward.1} parent=11 // pred_region
        _
      $region60: #{simsiam_forward.1} parent=11 // pred_fallthru
        _
      // Predicated region
      $region61: #{simsiam_forward.1} parent=11 // pred_check
        %p446 = pneg %p322
      $region62: #{simsiam_forward.1} parent=11 // pred_check_branch
        %448 = sbr.rel (%p446) target = $region64
      $region63: #{simsiam_forward.1} parent=11 // pred_region
        _
      $region64: #{simsiam_forward.1} parent=11 // pred_fallthru
        _
      // Predicated region
      $region65: #{simsiam_forward.1} parent=11 // pred_check
        %p449 = pneg %p343
      $region66: #{simsiam_forward.1} parent=11 // pred_check_branch
        %451 = sbr.rel (%p449) target = $region68
      $region67: #{simsiam_forward.1} parent=11 // pred_region
        _
      $region68: #{simsiam_forward.1} parent=11 // pred_fallthru
        _
    $region12: #{simsiam_forward.1} parent=5 // pred_fallthru
      _
    %p452 = scmp.lt.s32.totalorder %s23, 2
    // Predicated region
    $region69: #{simsiam_forward.1} parent=5 // pred_check
      %p453 = pneg %p452
    $region70: #{simsiam_forward.1} parent=5 // pred_check_branch
      %455 = sbr.rel (%p453) target = $region72
    $region71: #{simsiam_forward.1} parent=5 // pred_region
      // Predicated region
      $region73: #{simsiam_forward.1} parent=71 // pred_check
        %p456 = pneg %p43
      $region74: #{simsiam_forward.1} parent=71 // pred_check_branch
        %458 = sbr.rel (%p456) target = $region76
      $region75: #{simsiam_forward.1} parent=71 // pred_region
        %p459 = scmp.lt.s32.totalorder %s23, 1
        %s460 = scalar_select %p459, %s23, 1
        %s461 = smul.addr %s460, 8
        %s462 = smul.addr %s461, 4
        %s463 = scalar_lea.vmem %s0, %s462
      $region76: #{simsiam_forward.1} parent=71 // pred_fallthru
        _
    $region72: #{simsiam_forward.1} parent=5 // pred_fallthru
      _
    %p464 = scmp.le.s32.totalorder 1, %s23
    %p465 = scmp.lt.s32.totalorder %s23, 3
    %p466 = pnand %p464, %p465
    %p467 = pneg %p466
    // Predicated region
    $region77: #{simsiam_forward.1} parent=5 // pred_check
      _
    $region78: #{simsiam_forward.1} parent=5 // pred_check_branch
      %469 = sbr.rel (%p466) target = $region80
    $region79: #{simsiam_forward.1} parent=5 // pred_region
      %s470 = ssub.s32 %s23, 1
      %p471 = scmp.lt.s32.totalorder %s28, 1
      %s472 = scalar_select %p471, %s28, 1
      %s473 = smul.addr %s472, 8
      %s474 = smul.addr %s473, 4
      %s475 = scalar_lea.vmem %s0, %s474
      %p476 = pneg %p49
      %p477 = pneg %p46
      %p478 = pneg %p70
      %p479 = pneg %p67
      %p480 = pneg %p91
      %p481 = pneg %p88
      %p482 = pneg %p112
      %p483 = pneg %p109
      %p484 = pneg %p133
      %p485 = pneg %p130
      %p486 = pneg %p154
      %p487 = pneg %p151
      %p488 = pneg %p175
      %p489 = pneg %p172
      %p490 = pneg %p196
      %p491 = pneg %p193
      %p492 = pneg %p217
      %p493 = pneg %p214
      %p494 = pneg %p238
      %p495 = pneg %p235
      %p496 = pneg %p259
      %p497 = pneg %p256
      %p498 = pneg %p280
      %p499 = pneg %p277
      %p500 = pneg %p301
      %p501 = pneg %p298
      %p502 = pneg %p322
      %p503 = pneg %p319
      %p504 = pneg %p343
      %p505 = pneg %p340
      %p506 = pneg %p369
      %p507 = pneg %p366
      %p508 = scmp.lt.s32.totalorder %s28, 1
      %s509 = scalar_select %p508, %s28, 1
      %s510 = smul.addr %s509, 2
      %s511 = smul.addr %s510, 8
      %s512 = scalar_lea.vmem %s15, %s511
      %p513 = pneg %p395
      %p514 = pneg %p392
      %p515 = scmp.lt.s32.totalorder %s28, 1
      %s516 = scalar_select %p515, %s28, 1
      %s517 = smul.addr %s516, 2
      %s518 = smul.addr %s517, 8
      %s519 = scalar_lea.vmem %s16, %s518
      %p520 = scmp.lt.s32.totalorder %s28, 1
      %s521 = scalar_select %p520, %s28, 1
      %s522 = smul.addr %s521, 8
      %s523 = smul.addr %s522, 4
      %s524 = scalar_lea.vmem %s0, %s523
      %p525 = scmp.lt.s32.totalorder %s28, 1
      %s526 = scalar_select %p525, %s28, 1
      %s527 = smul.addr %s526, 2
      %s528 = smul.addr %s527, 8
      %s529 = scalar_lea.vmem %s15, %s528
      %p530 = scmp.lt.s32.totalorder %s28, 1
      %s531 = scalar_select %p530, %s28, 1
      %s532 = smul.addr %s531, 2
      %s533 = smul.addr %s532, 8
      %s534 = scalar_lea.vmem %s16, %s533
      %v536 = vld [vmem:[%s524] sm:$0xff]
      %v537 = vld [vmem:[%s524 + $0x8] sm:$0xff]
      %v538 = vld [vmem:[%s524 + $0x10] sm:$0xff]
      %v539 = vld [vmem:[%s524 + $0x18] sm:$0xff]
      %v540 = vld [vmem:[%s1] sm:$0xf]
      %v541 = vld [vmem:[%s1 + $0x4] sm:$0xf]
      %v542 = vld [vmem:[%s1 + $0x8] sm:$0xf]
      %v543 = vld [vmem:[%s1 + $0xc] sm:$0xf]
      %v544 = vld [vmem:[%s1 + $0x10] sm:$0xf]
      %v545 = vld [vmem:[%s1 + $0x14] sm:$0xf]
      %v546 = vld [vmem:[%s1 + $0x18] sm:$0xf]
      %v547 = vld [vmem:[%s1 + $0x1c] sm:$0xf]
      %v548 = vld [vmem:[%s1 + $0x20] sm:$0xf]
      %v549 = vld [vmem:[%s1 + $0x24] sm:$0xf]
      %v550 = vld [vmem:[%s1 + $0x28] sm:$0xf]
      %v551 = vld [vmem:[%s1 + $0x2c] sm:$0xf]
      %v552 = vld [vmem:[%s1 + $0x30] sm:$0xf]
      %v553 = vld [vmem:[%s1 + $0x34] sm:$0xf]
      %v554 = vld [vmem:[%s1 + $0x38] sm:$0xf]
      %v555 = vld [vmem:[%s1 + $0x3c] sm:$0xf]
      %v556 = vld [vmem:[%s1 + $0x40] sm:$0xf]
      %v557 = vld [vmem:[%s1 + $0x44] sm:$0xf]
      %v558 = vld [vmem:[%s1 + $0x48] sm:$0xf]
      %v559 = vld [vmem:[%s1 + $0x4c] sm:$0xf]
      %v560 = vld [vmem:[%s1 + $0x50] sm:$0xf]
      %v561 = vld [vmem:[%s1 + $0x54] sm:$0xf]
      %v562 = vld [vmem:[%s1 + $0x58] sm:$0xf]
      %v563 = vld [vmem:[%s1 + $0x5c] sm:$0xf]
      %v564 = vld [vmem:[%s1 + $0x60] sm:$0xf]
      %v565 = vld [vmem:[%s1 + $0x64] sm:$0xf]
      %v566 = vld [vmem:[%s1 + $0x68] sm:$0xf]
      %v567 = vld [vmem:[%s1 + $0x6c] sm:$0xf]
      %v568 = vld [vmem:[%s1 + $0x70] sm:$0xf]
      %v569 = vld [vmem:[%s1 + $0x74] sm:$0xf]
      %v570 = vld [vmem:[%s1 + $0x78] sm:$0xf]
      %v571 = vld [vmem:[%s1 + $0x7c] sm:$0xf]
      %v572 = vld [vmem:[%s1 + $0x80] sm:$0xf]
      %v573 = vld [vmem:[%s1 + $0x84] sm:$0xf]
      %v574 = vld [vmem:[%s1 + $0x88] sm:$0xf]
      %v575 = vld [vmem:[%s1 + $0x8c] sm:$0xf]
      %v576 = vld [vmem:[%s1 + $0x90] sm:$0xf]
      %v577 = vld [vmem:[%s1 + $0x94] sm:$0xf]
      %v578 = vld [vmem:[%s1 + $0x98] sm:$0xf]
      %v579 = vld [vmem:[%s1 + $0x9c] sm:$0xf]
      %v580 = vld [vmem:[%s1 + $0xa0] sm:$0xf]
      %v581 = vld [vmem:[%s1 + $0xa4] sm:$0xf]
      %v582 = vld [vmem:[%s1 + $0xa8] sm:$0xf]
      %v583 = vld [vmem:[%s1 + $0xac] sm:$0xf]
      %v584 = vld [vmem:[%s1 + $0xb0] sm:$0xf]
      %v585 = vld [vmem:[%s1 + $0xb4] sm:$0xf]
      %v586 = vld [vmem:[%s1 + $0xb8] sm:$0xf]
      %v587 = vld [vmem:[%s1 + $0xbc] sm:$0xf]
      %v588 = vld [vmem:[%s1 + $0xc0] sm:$0xf]
      %v589 = vld [vmem:[%s1 + $0xc4] sm:$0xf]
      %v590 = vld [vmem:[%s1 + $0xc8] sm:$0xf]
      %v591 = vld [vmem:[%s1 + $0xcc] sm:$0xf]
      %v592 = vld [vmem:[%s1 + $0xd0] sm:$0xf]
      %v593 = vld [vmem:[%s1 + $0xd4] sm:$0xf]
      %v594 = vld [vmem:[%s1 + $0xd8] sm:$0xf]
      %v595 = vld [vmem:[%s1 + $0xdc] sm:$0xf]
      %v596 = vld [vmem:[%s1 + $0xe0] sm:$0xf]
      %v597 = vld [vmem:[%s1 + $0xe4] sm:$0xf]
      %v598 = vld [vmem:[%s1 + $0xe8] sm:$0xf]
      %v599 = vld [vmem:[%s1 + $0xec] sm:$0xf]
      %v600 = vld [vmem:[%s1 + $0xf0] sm:$0xf]
      %v601 = vld [vmem:[%s1 + $0xf4] sm:$0xf]
      %v602 = vld [vmem:[%s1 + $0xf8] sm:$0xf]
      %v603 = vld [vmem:[%s1 + $0xfc] sm:$0xf]
      %v604 = vld [vmem:[%s1 + $0x100] sm:$0xf]
      %v605 = vld [vmem:[%s1 + $0x104] sm:$0xf]
      %v606 = vld [vmem:[%s1 + $0x108] sm:$0xf]
      %v607 = vld [vmem:[%s1 + $0x10c] sm:$0xf]
      %v608 = vld [vmem:[%s1 + $0x110] sm:$0xf]
      %v609 = vld [vmem:[%s1 + $0x114] sm:$0xf]
      %v610 = vld [vmem:[%s1 + $0x118] sm:$0xf]
      %v611 = vld [vmem:[%s1 + $0x11c] sm:$0xf]
      %v612 = vld [vmem:[%s1 + $0x120] sm:$0xf]
      %v613 = vld [vmem:[%s1 + $0x124] sm:$0xf]
      %v614 = vld [vmem:[%s1 + $0x128] sm:$0xf]
      %v615 = vld [vmem:[%s1 + $0x12c] sm:$0xf]
      %v616 = vld [vmem:[%s1 + $0x130] sm:$0xf]
      %v617 = vld [vmem:[%s1 + $0x134] sm:$0xf]
      %v618 = vld [vmem:[%s1 + $0x138] sm:$0xf]
      %v619 = vld [vmem:[%s1 + $0x13c] sm:$0xf]
      %v620 = vld [vmem:[%s1 + $0x140] sm:$0xf]
      %v621 = vld [vmem:[%s1 + $0x144] sm:$0xf]
      %v622 = vld [vmem:[%s1 + $0x148] sm:$0xf]
      %v623 = vld [vmem:[%s1 + $0x14c] sm:$0xf]
      %v624 = vld [vmem:[%s1 + $0x150] sm:$0xf]
      %v625 = vld [vmem:[%s1 + $0x154] sm:$0xf]
      %v626 = vld [vmem:[%s1 + $0x158] sm:$0xf]
      %v627 = vld [vmem:[%s1 + $0x15c] sm:$0xf]
      %v628 = vld [vmem:[%s1 + $0x160] sm:$0xf]
      %v629 = vld [vmem:[%s1 + $0x164] sm:$0xf]
      %v630 = vld [vmem:[%s1 + $0x168] sm:$0xf]
      %v631 = vld [vmem:[%s1 + $0x16c] sm:$0xf]
      %v632 = vld [vmem:[%s1 + $0x170] sm:$0xf]
      %v633 = vld [vmem:[%s1 + $0x174] sm:$0xf]
      %v634 = vld [vmem:[%s1 + $0x178] sm:$0xf]
      %v635 = vld [vmem:[%s1 + $0x17c] sm:$0xf]
      %v636 = vld [vmem:[%s1 + $0x180] sm:$0xf]
      %v637 = vld [vmem:[%s1 + $0x184] sm:$0xf]
      %v638 = vld [vmem:[%s1 + $0x188] sm:$0xf]
      %v639 = vld [vmem:[%s1 + $0x18c] sm:$0xf]
      %v640 = vld [vmem:[%s1 + $0x190] sm:$0xf]
      %v641 = vld [vmem:[%s1 + $0x194] sm:$0xf]
      %v642 = vld [vmem:[%s1 + $0x198] sm:$0xf]
      %v643 = vld [vmem:[%s1 + $0x19c] sm:$0xf]
      %v644 = vld [vmem:[%s1 + $0x1a0] sm:$0xf]
      %v645 = vld [vmem:[%s1 + $0x1a4] sm:$0xf]
      %v646 = vld [vmem:[%s1 + $0x1a8] sm:$0xf]
      %v647 = vld [vmem:[%s1 + $0x1ac] sm:$0xf]
      %v648 = vld [vmem:[%s1 + $0x1b0] sm:$0xf]
      %v649 = vld [vmem:[%s1 + $0x1b4] sm:$0xf]
      %v650 = vld [vmem:[%s1 + $0x1b8] sm:$0xf]
      %v651 = vld [vmem:[%s1 + $0x1bc] sm:$0xf]
      %v652 = vld [vmem:[%s1 + $0x1c0] sm:$0xf]
      %v653 = vld [vmem:[%s1 + $0x1c4] sm:$0xf]
      %v654 = vld [vmem:[%s1 + $0x1c8] sm:$0xf]
      %v655 = vld [vmem:[%s1 + $0x1cc] sm:$0xf]
      %v656 = vld [vmem:[%s1 + $0x1d0] sm:$0xf]
      %v657 = vld [vmem:[%s1 + $0x1d4] sm:$0xf]
      %v658 = vld [vmem:[%s1 + $0x1d8] sm:$0xf]
      %v659 = vld [vmem:[%s1 + $0x1dc] sm:$0xf]
      %v660 = vld [vmem:[%s1 + $0x1e0] sm:$0xf]
      %v661 = vld [vmem:[%s1 + $0x1e4] sm:$0xf]
      %v662 = vld [vmem:[%s1 + $0x1e8] sm:$0xf]
      %v663 = vld [vmem:[%s1 + $0x1ec] sm:$0xf]
      %v664 = vld [vmem:[%s1 + $0x1f0] sm:$0xf]
      %v665 = vld [vmem:[%s1 + $0x1f4] sm:$0xf]
      %v666 = vld [vmem:[%s1 + $0x1f8] sm:$0xf]
      %v667 = vld [vmem:[%s1 + $0x1fc] sm:$0xf]
      %v672 = vunpack.c.l.b16 %v536
      %v673 = vunpack.c.h.b16 %v536
      %v674 = vunpack.c.l.b16 %v537
      %v675 = vunpack.c.h.b16 %v537
      %v676 = vunpack.c.l.b16 %v538
      %v677 = vunpack.c.h.b16 %v538
      %v678 = vunpack.c.l.b16 %v539
      %v679 = vunpack.c.h.b16 %v539
      %v680 = vpack.c.b16 %v672, %v672
      %v681 = vpack.c.b16 %v673, %v673
      %v682 = vpack.c.b16 %v674, %v674
      %v683 = vpack.c.b16 %v675, %v675
      %v684 = vpack.c.b16 %v676, %v676
      %v685 = vpack.c.b16 %v677, %v677
      %v686 = vpack.c.b16 %v678, %v678
      %v687 = vpack.c.b16 %v679, %v679
      %v824 = vunpack.c.l.b16 %v540
      %v825 = vunpack.c.l.b16 %v541
      %v826 = vunpack.c.l.b16 %v542
      %v827 = vunpack.c.l.b16 %v543
      %v828 = vunpack.c.l.b16 %v544
      %v829 = vunpack.c.l.b16 %v545
      %v830 = vunpack.c.l.b16 %v546
      %v831 = vunpack.c.l.b16 %v547
      %v832 = vunpack.c.l.b16 %v548
      %v833 = vunpack.c.l.b16 %v549
      %v834 = vunpack.c.l.b16 %v550
      %v835 = vunpack.c.l.b16 %v551
      %v836 = vunpack.c.l.b16 %v552
      %v837 = vunpack.c.l.b16 %v553
      %v838 = vunpack.c.l.b16 %v554
      %v839 = vunpack.c.l.b16 %v555
      %v840 = vunpack.c.l.b16 %v556
      %v841 = vunpack.c.l.b16 %v557
      %v842 = vunpack.c.l.b16 %v558
      %v843 = vunpack.c.l.b16 %v559
      %v844 = vunpack.c.l.b16 %v560
      %v845 = vunpack.c.l.b16 %v561
      %v846 = vunpack.c.l.b16 %v562
      %v847 = vunpack.c.l.b16 %v563
      %v848 = vunpack.c.l.b16 %v564
      %v849 = vunpack.c.l.b16 %v565
      %v850 = vunpack.c.l.b16 %v566
      %v851 = vunpack.c.l.b16 %v567
      %v852 = vunpack.c.l.b16 %v568
      %v853 = vunpack.c.l.b16 %v569
      %v854 = vunpack.c.l.b16 %v570
      %v855 = vunpack.c.l.b16 %v571
      %v856 = vunpack.c.l.b16 %v572
      %v857 = vunpack.c.l.b16 %v573
      %v858 = vunpack.c.l.b16 %v574
      %v859 = vunpack.c.l.b16 %v575
      %v860 = vunpack.c.l.b16 %v576
      %v861 = vunpack.c.l.b16 %v577
      %v862 = vunpack.c.l.b16 %v578
      %v863 = vunpack.c.l.b16 %v579
      %v864 = vunpack.c.l.b16 %v580
      %v865 = vunpack.c.l.b16 %v581
      %v866 = vunpack.c.l.b16 %v582
      %v867 = vunpack.c.l.b16 %v583
      %v868 = vunpack.c.l.b16 %v584
      %v869 = vunpack.c.l.b16 %v585
      %v870 = vunpack.c.l.b16 %v586
      %v871 = vunpack.c.l.b16 %v587
      %v872 = vunpack.c.l.b16 %v588
      %v873 = vunpack.c.l.b16 %v589
      %v874 = vunpack.c.l.b16 %v590
      %v875 = vunpack.c.l.b16 %v591
      %v876 = vunpack.c.l.b16 %v592
      %v877 = vunpack.c.l.b16 %v593
      %v878 = vunpack.c.l.b16 %v594
      %v879 = vunpack.c.l.b16 %v595
      %v880 = vunpack.c.l.b16 %v596
      %v881 = vunpack.c.l.b16 %v597
      %v882 = vunpack.c.l.b16 %v598
      %v883 = vunpack.c.l.b16 %v599
      %v884 = vunpack.c.l.b16 %v600
      %v885 = vunpack.c.l.b16 %v601
      %v886 = vunpack.c.l.b16 %v602
      %v887 = vunpack.c.l.b16 %v603
      %v888 = vunpack.c.l.b16 %v604
      %v889 = vunpack.c.l.b16 %v605
      %v890 = vunpack.c.l.b16 %v606
      %v891 = vunpack.c.l.b16 %v607
      %v892 = vunpack.c.l.b16 %v608
      %v893 = vunpack.c.l.b16 %v609
      %v894 = vunpack.c.l.b16 %v610
      %v895 = vunpack.c.l.b16 %v611
      %v896 = vunpack.c.l.b16 %v612
      %v897 = vunpack.c.l.b16 %v613
      %v898 = vunpack.c.l.b16 %v614
      %v899 = vunpack.c.l.b16 %v615
      %v900 = vunpack.c.l.b16 %v616
      %v901 = vunpack.c.l.b16 %v617
      %v902 = vunpack.c.l.b16 %v618
      %v903 = vunpack.c.l.b16 %v619
      %v904 = vunpack.c.l.b16 %v620
      %v905 = vunpack.c.l.b16 %v621
      %v906 = vunpack.c.l.b16 %v622
      %v907 = vunpack.c.l.b16 %v623
      %v908 = vunpack.c.l.b16 %v624
      %v909 = vunpack.c.l.b16 %v625
      %v910 = vunpack.c.l.b16 %v626
      %v911 = vunpack.c.l.b16 %v627
      %v912 = vunpack.c.l.b16 %v628
      %v913 = vunpack.c.l.b16 %v629
      %v914 = vunpack.c.l.b16 %v630
      %v915 = vunpack.c.l.b16 %v631
      %v916 = vunpack.c.l.b16 %v632
      %v917 = vunpack.c.l.b16 %v633
      %v918 = vunpack.c.l.b16 %v634
      %v919 = vunpack.c.l.b16 %v635
      %v920 = vunpack.c.l.b16 %v636
      %v921 = vunpack.c.l.b16 %v637
      %v922 = vunpack.c.l.b16 %v638
      %v923 = vunpack.c.l.b16 %v639
      %v924 = vunpack.c.l.b16 %v640
      %v925 = vunpack.c.l.b16 %v641
      %v926 = vunpack.c.l.b16 %v642
      %v927 = vunpack.c.l.b16 %v643
      %v928 = vunpack.c.l.b16 %v644
      %v929 = vunpack.c.l.b16 %v645
      %v930 = vunpack.c.l.b16 %v646
      %v931 = vunpack.c.l.b16 %v647
      %v932 = vunpack.c.l.b16 %v648
      %v933 = vunpack.c.l.b16 %v649
      %v934 = vunpack.c.l.b16 %v650
      %v935 = vunpack.c.l.b16 %v651
      %v936 = vunpack.c.l.b16 %v652
      %v937 = vunpack.c.l.b16 %v653
      %v938 = vunpack.c.l.b16 %v654
      %v939 = vunpack.c.l.b16 %v655
      %v940 = vunpack.c.l.b16 %v656
      %v941 = vunpack.c.l.b16 %v657
      %v942 = vunpack.c.l.b16 %v658
      %v943 = vunpack.c.l.b16 %v659
      %v944 = vunpack.c.l.b16 %v660
      %v945 = vunpack.c.l.b16 %v661
      %v946 = vunpack.c.l.b16 %v662
      %v947 = vunpack.c.l.b16 %v663
      %v948 = vunpack.c.l.b16 %v664
      %v949 = vunpack.c.l.b16 %v665
      %v950 = vunpack.c.l.b16 %v666
      %v951 = vunpack.c.l.b16 %v667
      %v952 = vpack.c.b16 %v825, %v824
      %v953 = vpack.c.b16 %v827, %v826
      %v954 = vpack.c.b16 %v829, %v828
      %v955 = vpack.c.b16 %v831, %v830
      %v956 = vpack.c.b16 %v833, %v832
      %v957 = vpack.c.b16 %v835, %v834
      %v958 = vpack.c.b16 %v837, %v836
      %v959 = vpack.c.b16 %v839, %v838
      %v960 = vpack.c.b16 %v841, %v840
      %v961 = vpack.c.b16 %v843, %v842
      %v962 = vpack.c.b16 %v845, %v844
      %v963 = vpack.c.b16 %v847, %v846
      %v964 = vpack.c.b16 %v849, %v848
      %v965 = vpack.c.b16 %v851, %v850
      %v966 = vpack.c.b16 %v853, %v852
      %v967 = vpack.c.b16 %v855, %v854
      %v968 = vpack.c.b16 %v857, %v856
      %v969 = vpack.c.b16 %v859, %v858
      %v970 = vpack.c.b16 %v861, %v860
      %v971 = vpack.c.b16 %v863, %v862
      %v972 = vpack.c.b16 %v865, %v864
      %v973 = vpack.c.b16 %v867, %v866
      %v974 = vpack.c.b16 %v869, %v868
      %v975 = vpack.c.b16 %v871, %v870
      %v976 = vpack.c.b16 %v873, %v872
      %v977 = vpack.c.b16 %v875, %v874
      %v978 = vpack.c.b16 %v877, %v876
      %v979 = vpack.c.b16 %v879, %v878
      %v980 = vpack.c.b16 %v881, %v880
      %v981 = vpack.c.b16 %v883, %v882
      %v982 = vpack.c.b16 %v885, %v884
      %v983 = vpack.c.b16 %v887, %v886
      %v984 = vpack.c.b16 %v889, %v888
      %v985 = vpack.c.b16 %v891, %v890
      %v986 = vpack.c.b16 %v893, %v892
      %v987 = vpack.c.b16 %v895, %v894
      %v988 = vpack.c.b16 %v897, %v896
      %v989 = vpack.c.b16 %v899, %v898
      %v990 = vpack.c.b16 %v901, %v900
      %v991 = vpack.c.b16 %v903, %v902
      %v992 = vpack.c.b16 %v905, %v904
      %v993 = vpack.c.b16 %v907, %v906
      %v994 = vpack.c.b16 %v909, %v908
      %v995 = vpack.c.b16 %v911, %v910
      %v996 = vpack.c.b16 %v913, %v912
      %v997 = vpack.c.b16 %v915, %v914
      %v998 = vpack.c.b16 %v917, %v916
      %v999 = vpack.c.b16 %v919, %v918
      %v1000 = vpack.c.b16 %v921, %v920
      %v1001 = vpack.c.b16 %v923, %v922
      %v1002 = vpack.c.b16 %v925, %v924
      %v1003 = vpack.c.b16 %v927, %v926
      %v1004 = vpack.c.b16 %v929, %v928
      %v1005 = vpack.c.b16 %v931, %v930
      %v1006 = vpack.c.b16 %v933, %v932
      %v1007 = vpack.c.b16 %v935, %v934
      %v1008 = vpack.c.b16 %v937, %v936
      %v1009 = vpack.c.b16 %v939, %v938
      %v1010 = vpack.c.b16 %v941, %v940
      %v1011 = vpack.c.b16 %v943, %v942
      %v1012 = vpack.c.b16 %v945, %v944
      %v1013 = vpack.c.b16 %v947, %v946
      %v1014 = vpack.c.b16 %v949, %v948
      %v1015 = vpack.c.b16 %v951, %v950
      %1080 = vmatprep.subr.bf16.mxu0 0
      %1081 = vmatpush1.bf16.msra.mxu0 %v952
      %1082 = vmatprep.subr.bf16.mxu0 0
      %1083 = vmatpush1.bf16.msra.mxu0 %v953
      %1084 = vmatprep.subr.bf16.mxu0 0
      %1085 = vmatpush1.bf16.msra.mxu0 %v954
      %1086 = vmatprep.subr.bf16.mxu0 0
      %1087 = vmatpush1.bf16.msra.mxu0 %v955
      %1088 = vmatprep.subr.bf16.mxu0 0
      %1089 = vmatpush1.bf16.msra.mxu0 %v956
      %1090 = vmatprep.subr.bf16.mxu0 0
      %1091 = vmatpush1.bf16.msra.mxu0 %v957
      %1092 = vmatprep.subr.bf16.mxu0 0
      %1093 = vmatpush1.bf16.msra.mxu0 %v958
      %1094 = vmatprep.subr.bf16.mxu0 0
      %1095 = vmatpush1.bf16.msra.mxu0 %v959
      %1096 = vmatprep.subr.bf16.mxu0 0
      %1097 = vmatpush1.bf16.msra.mxu0 %v960
      %1098 = vmatprep.subr.bf16.mxu0 0
      %1099 = vmatpush1.bf16.msra.mxu0 %v961
      %1100 = vmatprep.subr.bf16.mxu0 0
      %1101 = vmatpush1.bf16.msra.mxu0 %v962
      %1102 = vmatprep.subr.bf16.mxu0 0
      %1103 = vmatpush1.bf16.msra.mxu0 %v963
      %1104 = vmatprep.subr.bf16.mxu0 0
      %1105 = vmatpush1.bf16.msra.mxu0 %v964
      %1106 = vmatprep.subr.bf16.mxu0 0
      %1107 = vmatpush1.bf16.msra.mxu0 %v965
      %1108 = vmatprep.subr.bf16.mxu0 0
      %1109 = vmatpush1.bf16.msra.mxu0 %v966
      %1110 = vmatprep.subr.bf16.mxu0 0
      %1111 = vmatpush1.bf16.msra.mxu0 %v967
      %1112 = vmatprep.mubr.bf16.mxu0 %v681
      %1113 = vmatmul.mubr.bf16.gmra.mrb[0].mxu0 %v680
      %v1114 = vpop.f32.mrb[0].mxu0
      %v1115 = vadd.f32 0.0, %v1114
      %v1116 = vpop.f32.mrb[0].mxu0
      %v1117 = vpop.f32.mrb[0].mxu0
      %v1118 = vpop.f32.mrb[0].mxu0
      %1119 = vdwg.mxu0
      %1120 = vmatprep.subr.bf16.mxu0 0
      %1121 = vmatpush1.bf16.msra.mxu0 %v968
      %1122 = vmatprep.subr.bf16.mxu0 0
      %1123 = vmatpush1.bf16.msra.mxu0 %v969
      %1124 = vmatprep.subr.bf16.mxu0 0
      %1125 = vmatpush1.bf16.msra.mxu0 %v970
      %1126 = vmatprep.subr.bf16.mxu0 0
      %1127 = vmatpush1.bf16.msra.mxu0 %v971
      %1128 = vmatprep.subr.bf16.mxu0 0
      %1129 = vmatpush1.bf16.msra.mxu0 %v972
      %1130 = vmatprep.subr.bf16.mxu0 0
      %1131 = vmatpush1.bf16.msra.mxu0 %v973
      %1132 = vmatprep.subr.bf16.mxu0 0
      %1133 = vmatpush1.bf16.msra.mxu0 %v974
      %1134 = vmatprep.subr.bf16.mxu0 0
      %1135 = vmatpush1.bf16.msra.mxu0 %v975
      %1136 = vmatprep.subr.bf16.mxu0 0
      %1137 = vmatpush1.bf16.msra.mxu0 %v976
      %1138 = vmatprep.subr.bf16.mxu0 0
      %1139 = vmatpush1.bf16.msra.mxu0 %v977
      %1140 = vmatprep.subr.bf16.mxu0 0
      %1141 = vmatpush1.bf16.msra.mxu0 %v978
      %1142 = vmatprep.subr.bf16.mxu0 0
      %1143 = vmatpush1.bf16.msra.mxu0 %v979
      %1144 = vmatprep.subr.bf16.mxu0 0
      %1145 = vmatpush1.bf16.msra.mxu0 %v980
      %1146 = vmatprep.subr.bf16.mxu0 0
      %1147 = vmatpush1.bf16.msra.mxu0 %v981
      %1148 = vmatprep.subr.bf16.mxu0 0
      %1149 = vmatpush1.bf16.msra.mxu0 %v982
      %1150 = vmatprep.subr.bf16.mxu0 0
      %1151 = vmatpush1.bf16.msra.mxu0 %v983
      %1152 = vmatprep.mubr.bf16.mxu0 %v683
      %1153 = vmatmul.mubr.bf16.gmra.mrb[0].mxu0 %v682
      %v1154 = vpop.f32.mrb[0].mxu0
      %v1155 = vadd.f32 %v1115, %v1154
      %v1156 = vpop.f32.mrb[0].mxu0
      %v1157 = vpop.f32.mrb[0].mxu0
      %v1158 = vpop.f32.mrb[0].mxu0
      %1159 = vdwg.mxu0
      %1160 = vmatprep.subr.bf16.mxu0 0
      %1161 = vmatpush1.bf16.msra.mxu0 %v984
      %1162 = vmatprep.subr.bf16.mxu0 0
      %1163 = vmatpush1.bf16.msra.mxu0 %v985
      %1164 = vmatprep.subr.bf16.mxu0 0
      %1165 = vmatpush1.bf16.msra.mxu0 %v986
      %1166 = vmatprep.subr.bf16.mxu0 0
      %1167 = vmatpush1.bf16.msra.mxu0 %v987
      %1168 = vmatprep.subr.bf16.mxu0 0
      %1169 = vmatpush1.bf16.msra.mxu0 %v988
      %1170 = vmatprep.subr.bf16.mxu0 0
      %1171 = vmatpush1.bf16.msra.mxu0 %v989
      %1172 = vmatprep.subr.bf16.mxu0 0
      %1173 = vmatpush1.bf16.msra.mxu0 %v990
      %1174 = vmatprep.subr.bf16.mxu0 0
      %1175 = vmatpush1.bf16.msra.mxu0 %v991
      %1176 = vmatprep.subr.bf16.mxu0 0
      %1177 = vmatpush1.bf16.msra.mxu0 %v992
      %1178 = vmatprep.subr.bf16.mxu0 0
      %1179 = vmatpush1.bf16.msra.mxu0 %v993
      %1180 = vmatprep.subr.bf16.mxu0 0
      %1181 = vmatpush1.bf16.msra.mxu0 %v994
      %1182 = vmatprep.subr.bf16.mxu0 0
      %1183 = vmatpush1.bf16.msra.mxu0 %v995
      %1184 = vmatprep.subr.bf16.mxu0 0
      %1185 = vmatpush1.bf16.msra.mxu0 %v996
      %1186 = vmatprep.subr.bf16.mxu0 0
      %1187 = vmatpush1.bf16.msra.mxu0 %v997
      %1188 = vmatprep.subr.bf16.mxu0 0
      %1189 = vmatpush1.bf16.msra.mxu0 %v998
      %1190 = vmatprep.subr.bf16.mxu0 0
      %1191 = vmatpush1.bf16.msra.mxu0 %v999
      %1192 = vmatprep.mubr.bf16.mxu0 %v685
      %1193 = vmatmul.mubr.bf16.gmra.mrb[0].mxu0 %v684
      %v1194 = vpop.f32.mrb[0].mxu0
      %v1195 = vadd.f32 %v1155, %v1194
      %v1196 = vpop.f32.mrb[0].mxu0
      %v1197 = vpop.f32.mrb[0].mxu0
      %v1198 = vpop.f32.mrb[0].mxu0
      %1199 = vdwg.mxu0
      %1200 = vmatprep.subr.bf16.mxu0 0
      %1201 = vmatpush1.bf16.msra.mxu0 %v1000
      %1202 = vmatprep.subr.bf16.mxu0 0
      %1203 = vmatpush1.bf16.msra.mxu0 %v1001
      %1204 = vmatprep.subr.bf16.mxu0 0
      %1205 = vmatpush1.bf16.msra.mxu0 %v1002
      %1206 = vmatprep.subr.bf16.mxu0 0
      %1207 = vmatpush1.bf16.msra.mxu0 %v1003
      %1208 = vmatprep.subr.bf16.mxu0 0
      %1209 = vmatpush1.bf16.msra.mxu0 %v1004
      %1210 = vmatprep.subr.bf16.mxu0 0
      %1211 = vmatpush1.bf16.msra.mxu0 %v1005
      %1212 = vmatprep.subr.bf16.mxu0 0
      %1213 = vmatpush1.bf16.msra.mxu0 %v1006
      %1214 = vmatprep.subr.bf16.mxu0 0
      %1215 = vmatpush1.bf16.msra.mxu0 %v1007
      %1216 = vmatprep.subr.bf16.mxu0 0
      %1217 = vmatpush1.bf16.msra.mxu0 %v1008
      %1218 = vmatprep.subr.bf16.mxu0 0
      %1219 = vmatpush1.bf16.msra.mxu0 %v1009
      %1220 = vmatprep.subr.bf16.mxu0 0
      %1221 = vmatpush1.bf16.msra.mxu0 %v1010
      %1222 = vmatprep.subr.bf16.mxu0 0
      %1223 = vmatpush1.bf16.msra.mxu0 %v1011
      %1224 = vmatprep.subr.bf16.mxu0 0
      %1225 = vmatpush1.bf16.msra.mxu0 %v1012
      %1226 = vmatprep.subr.bf16.mxu0 0
      %1227 = vmatpush1.bf16.msra.mxu0 %v1013
      %1228 = vmatprep.subr.bf16.mxu0 0
      %1229 = vmatpush1.bf16.msra.mxu0 %v1014
      %1230 = vmatprep.subr.bf16.mxu0 0
      %1231 = vmatpush1.bf16.msra.mxu0 %v1015
      %1232 = vmatprep.mubr.bf16.mxu0 %v687
      %1233 = vmatmul.mubr.bf16.gmra.mrb[0].mxu0 %v686
      %v1234 = vpop.f32.mrb[0].mxu0
      %v1235 = vadd.f32 %v1195, %v1234
      %v1236 = vpop.f32.mrb[0].mxu0
      %v1237 = vpop.f32.mrb[0].mxu0
      %v1238 = vpop.f32.mrb[0].mxu0
      %1239 = vdwg.mxu0
      %v1240 = vpack.c.bf16 %v1235, %v1235
      %v1241 = vld [vmem:[%s2] sm:$0xf]
      %v1242 = vld [vmem:[%s2 + $0x4] sm:$0xf]
      %v1243 = vld [vmem:[%s2 + $0x8] sm:$0xf]
      %v1244 = vld [vmem:[%s2 + $0xc] sm:$0xf]
      %v1245 = vld [vmem:[%s2 + $0x10] sm:$0xf]
      %v1246 = vld [vmem:[%s2 + $0x14] sm:$0xf]
      %v1247 = vld [vmem:[%s2 + $0x18] sm:$0xf]
      %v1248 = vld [vmem:[%s2 + $0x1c] sm:$0xf]
      %v1249 = vld [vmem:[%s2 + $0x20] sm:$0xf]
      %v1250 = vld [vmem:[%s2 + $0x24] sm:$0xf]
      %v1251 = vld [vmem:[%s2 + $0x28] sm:$0xf]
      %v1252 = vld [vmem:[%s2 + $0x2c] sm:$0xf]
      %v1253 = vld [vmem:[%s2 + $0x30] sm:$0xf]
      %v1254 = vld [vmem:[%s2 + $0x34] sm:$0xf]
      %v1255 = vld [vmem:[%s2 + $0x38] sm:$0xf]
      %v1256 = vld [vmem:[%s2 + $0x3c] sm:$0xf]
      %v1273 = vunpack.c.l.b16 %v1241
      %v1274 = vunpack.c.l.b16 %v1242
      %v1275 = vunpack.c.l.b16 %v1243
      %v1276 = vunpack.c.l.b16 %v1244
      %v1277 = vunpack.c.l.b16 %v1245
      %v1278 = vunpack.c.l.b16 %v1246
      %v1279 = vunpack.c.l.b16 %v1247
      %v1280 = vunpack.c.l.b16 %v1248
      %v1281 = vunpack.c.l.b16 %v1249
      %v1282 = vunpack.c.l.b16 %v1250
      %v1283 = vunpack.c.l.b16 %v1251
      %v1284 = vunpack.c.l.b16 %v1252
      %v1285 = vunpack.c.l.b16 %v1253
      %v1286 = vunpack.c.l.b16 %v1254
      %v1287 = vunpack.c.l.b16 %v1255
      %v1288 = vunpack.c.l.b16 %v1256
      %v1289 = vpack.c.b16 %v1274, %v1273
      %v1290 = vpack.c.b16 %v1276, %v1275
      %v1291 = vpack.c.b16 %v1278, %v1277
      %v1292 = vpack.c.b16 %v1280, %v1279
      %v1293 = vpack.c.b16 %v1282, %v1281
      %v1294 = vpack.c.b16 %v1284, %v1283
      %v1295 = vpack.c.b16 %v1286, %v1285
      %v1296 = vpack.c.b16 %v1288, %v1287
      %1305 = vmatprep.subr.bf16.mxu0 0
      %1306 = vmatpush1.bf16.msra.mxu0 %v1289
      %1307 = vmatprep.subr.bf16.mxu0 0
      %1308 = vmatpush1.bf16.msra.mxu0 %v1290
      %1309 = vmatprep.subr.bf16.mxu0 0
      %1310 = vmatpush1.bf16.msra.mxu0 %v1291
      %1311 = vmatprep.subr.bf16.mxu0 0
      %1312 = vmatpush1.bf16.msra.mxu0 %v1292
      %1313 = vmatprep.subr.bf16.mxu0 0
      %1314 = vmatpush1.bf16.msra.mxu0 %v1293
      %1315 = vmatprep.subr.bf16.mxu0 0
      %1316 = vmatpush1.bf16.msra.mxu0 %v1294
      %1317 = vmatprep.subr.bf16.mxu0 0
      %1318 = vmatpush1.bf16.msra.mxu0 %v1295
      %1319 = vmatprep.subr.bf16.mxu0 0
      %1320 = vmatpush1.bf16.msra.mxu0 %v1296
      %1321 = vmatprep.subr.bf16.mxu0 0
      %1322 = vmatpush1.bf16.msra.mxu0 0
      %1323 = vmatprep.subr.bf16.mxu0 0
      %1324 = vmatpush1.bf16.msra.mxu0 0
      %1325 = vmatprep.subr.bf16.mxu0 0
      %1326 = vmatpush1.bf16.msra.mxu0 0
      %1327 = vmatprep.subr.bf16.mxu0 0
      %1328 = vmatpush1.bf16.msra.mxu0 0
      %1329 = vmatprep.subr.bf16.mxu0 0
      %1330 = vmatpush1.bf16.msra.mxu0 0
      %1331 = vmatprep.subr.bf16.mxu0 0
      %1332 = vmatpush1.bf16.msra.mxu0 0
      %1333 = vmatprep.subr.bf16.mxu0 0
      %1334 = vmatpush1.bf16.msra.mxu0 0
      %1335 = vmatprep.subr.bf16.mxu0 0
      %1336 = vmatpush1.bf16.msra.mxu0 0
      %1337 = vmatprep.mubr.bf16.mxu0 0
      %1338 = vmatmul.mubr.bf16.gmra.mrb[0].mxu0 %v1240
      %v1339 = vpop.f32.mrb[0].mxu0
      %v1340 = vadd.f32 0.0, %v1339
      %v1341 = vpop.f32.mrb[0].mxu0
      %v1342 = vpop.f32.mrb[0].mxu0
      %v1343 = vpop.f32.mrb[0].mxu0
      %1344 = vdwg.mxu0
      %v1345 = vld [vmem:[%s3] sm:$0x1]
      %v1346 = vld [vmem:[%s4] sm:$0x1]
      %v1347 = vrot.slane %v1340, 4
      %v1348 = vadd.f32 %v1340, %v1347
      %v1349 = vrot.slane %v1348, 2
      %v1350 = vadd.f32 %v1348, %v1349
      %v1351 = vrot.slane %v1350, 1
      %v1352 = vadd.f32 %v1350, %v1351
      %v1353 = vmul.f32 %v1340, %v1340
      %v1354 = vrot.slane %v1353, 4
      %v1355 = vadd.f32 %v1353, %v1354
      %v1356 = vrot.slane %v1355, 2
      %v1357 = vadd.f32 %v1355, %v1356
      %v1358 = vrot.slane %v1357, 1
      %v1359 = vadd.f32 %v1357, %v1358
      %v1360 = vmul.f32 %v1352, 0.125
      %v1361 = vmul.f32 %v1359, 0.125
      %v1362 = vmul.f32 %v1360, %v1360
      %v1363 = vsub.f32 %v1361, %v1362
      %v1364 = vmax.f32 %v1363, 0.0
      %v1365 = vsub.f32 %v1340, %v1360
      %v1366 = vadd.f32 %v1364, 1e-05
      %v1367 = vrsqrt.pop %v1366
      %v1368 = vmul.f32 %v1365, %v1367
      %v1370 = vlaneseq
      %v1371 = vshrl.u32 %v1370, 7
      %v1372 = vsub.s32 0, %v1371
      %v1373 = vrot.slane %v1345, %v1372
      %v1375 = vmul.f32 %v1368, %v1373
      %v1377 = vlaneseq
      %v1378 = vshrl.u32 %v1377, 7
      %v1379 = vsub.s32 0, %v1378
      %v1380 = vrot.slane %v1346, %v1379
      %v1382 = vadd.f32 %v1375, %v1380
      %v1383 = vmax.f32 %v1382, 0.0
      %v1384 = vpack.c.bf16 %v1383, %v1383
      %v1385 = vld [vmem:[%s5] sm:$0xf]
      %v1386 = vld [vmem:[%s5 + $0x4] sm:$0xf]
      %v1387 = vld [vmem:[%s5 + $0x8] sm:$0xf]
      %v1388 = vld [vmem:[%s5 + $0xc] sm:$0xf]
      %v1389 = vld [vmem:[%s5 + $0x10] sm:$0xf]
      %v1390 = vld [vmem:[%s5 + $0x14] sm:$0xf]
      %v1391 = vld [vmem:[%s5 + $0x18] sm:$0xf]
      %v1392 = vld [vmem:[%s5 + $0x1c] sm:$0xf]
      %v1393 = vld [vmem:[%s5 + $0x20] sm:$0xf]
      %v1394 = vld [vmem:[%s5 + $0x24] sm:$0xf]
      %v1395 = vld [vmem:[%s5 + $0x28] sm:$0xf]
      %v1396 = vld [vmem:[%s5 + $0x2c] sm:$0xf]
      %v1397 = vld [vmem:[%s5 + $0x30] sm:$0xf]
      %v1398 = vld [vmem:[%s5 + $0x34] sm:$0xf]
      %v1399 = vld [vmem:[%s5 + $0x38] sm:$0xf]
      %v1400 = vld [vmem:[%s5 + $0x3c] sm:$0xf]
      %v1417 = vunpack.c.l.b16 %v1385
      %v1418 = vunpack.c.l.b16 %v1386
      %v1419 = vunpack.c.l.b16 %v1387
      %v1420 = vunpack.c.l.b16 %v1388
      %v1421 = vunpack.c.l.b16 %v1389
      %v1422 = vunpack.c.l.b16 %v1390
      %v1423 = vunpack.c.l.b16 %v1391
      %v1424 = vunpack.c.l.b16 %v1392
      %v1425 = vunpack.c.l.b16 %v1393
      %v1426 = vunpack.c.l.b16 %v1394
      %v1427 = vunpack.c.l.b16 %v1395
      %v1428 = vunpack.c.l.b16 %v1396
      %v1429 = vunpack.c.l.b16 %v1397
      %v1430 = vunpack.c.l.b16 %v1398
      %v1431 = vunpack.c.l.b16 %v1399
      %v1432 = vunpack.c.l.b16 %v1400
      %v1433 = vpack.c.b16 %v1418, %v1417
      %v1434 = vpack.c.b16 %v1420, %v1419
      %v1435 = vpack.c.b16 %v1422, %v1421
      %v1436 = vpack.c.b16 %v1424, %v1423
      %v1437 = vpack.c.b16 %v1426, %v1425
      %v1438 = vpack.c.b16 %v1428, %v1427
      %v1439 = vpack.c.b16 %v1430, %v1429
      %v1440 = vpack.c.b16 %v1432, %v1431
      %1449 = vmatprep.subr.bf16.mxu0 0
      %1450 = vmatpush1.bf16.msra.mxu0 %v1433
      %1451 = vmatprep.subr.bf16.mxu0 0
      %1452 = vmatpush1.bf16.msra.mxu0 %v1434
      %1453 = vmatprep.subr.bf16.mxu0 0
      %1454 = vmatpush1.bf16.msra.mxu0 %v1435
      %1455 = vmatprep.subr.bf16.mxu0 0
      %1456 = vmatpush1.bf16.msra.mxu0 %v1436
      %1457 = vmatprep.subr.bf16.mxu0 0
      %1458 = vmatpush1.bf16.msra.mxu0 %v1437
      %1459 = vmatprep.subr.bf16.mxu0 0
      %1460 = vmatpush1.bf16.msra.mxu0 %v1438
      %1461 = vmatprep.subr.bf16.mxu0 0
      %1462 = vmatpush1.bf16.msra.mxu0 %v1439
      %1463 = vmatprep.subr.bf16.mxu0 0
      %1464 = vmatpush1.bf16.msra.mxu0 %v1440
      %1465 = vmatprep.subr.bf16.mxu0 0
      %1466 = vmatpush1.bf16.msra.mxu0 0
      %1467 = vmatprep.subr.bf16.mxu0 0
      %1468 = vmatpush1.bf16.msra.mxu0 0
      %1469 = vmatprep.subr.bf16.mxu0 0
      %1470 = vmatpush1.bf16.msra.mxu0 0
      %1471 = vmatprep.subr.bf16.mxu0 0
      %1472 = vmatpush1.bf16.msra.mxu0 0
      %1473 = vmatprep.subr.bf16.mxu0 0
      %1474 = vmatpush1.bf16.msra.mxu0 0
      %1475 = vmatprep.subr.bf16.mxu0 0
      %1476 = vmatpush1.bf16.msra.mxu0 0
      %1477 = vmatprep.subr.bf16.mxu0 0
      %1478 = vmatpush1.bf16.msra.mxu0 0
      %1479 = vmatprep.subr.bf16.mxu0 0
      %1480 = vmatpush1.bf16.msra.mxu0 0
      %1481 = vmatprep.mubr.bf16.mxu0 0
      %1482 = vmatmul.mubr.bf16.gmra.mrb[0].mxu0 %v1384
      %v1483 = vpop.f32.mrb[0].mxu0
      %v1484 = vadd.f32 0.0, %v1483
      %v1485 = vpop.f32.mrb[0].mxu0
      %v1486 = vpop.f32.mrb[0].mxu0
      %v1487 = vpop.f32.mrb[0].mxu0
      %1488 = vdwg.mxu0
      %v1489 = vld [vmem:[%s6] sm:$0x1]
      %v1490 = vld [vmem:[%s7] sm:$0x1]
      %v1491 = vrot.slane %v1484, 4
      %v1492 = vadd.f32 %v1484, %v1491
      %v1493 = vrot.slane %v1492, 2
      %v1494 = vadd.f32 %v1492, %v1493
      %v1495 = vrot.slane %v1494, 1
      %v1496 = vadd.f32 %v1494, %v1495
      %v1497 = vmul.f32 %v1484, %v1484
      %v1498 = vrot.slane %v1497, 4
      %v1499 = vadd.f32 %v1497, %v1498
      %v1500 = vrot.slane %v1499, 2
      %v1501 = vadd.f32 %v1499, %v1500
      %v1502 = vrot.slane %v1501, 1
      %v1503 = vadd.f32 %v1501, %v1502
      %v1504 = vmul.f32 %v1496, 0.125
      %v1505 = vmul.f32 %v1503, 0.125
      %v1506 = vmul.f32 %v1504, %v1504
      %v1507 = vsub.f32 %v1505, %v1506
      %v1508 = vmax.f32 %v1507, 0.0
      %v1509 = vsub.f32 %v1484, %v1504
      %v1510 = vadd.f32 %v1508, 1e-05
      %v1511 = vrsqrt.pop %v1510
      %v1512 = vmul.f32 %v1509, %v1511
      %v1514 = vlaneseq
      %v1515 = vshrl.u32 %v1514, 7
      %v1516 = vsub.s32 0, %v1515
      %v1517 = vrot.slane %v1489, %v1516
      %v1519 = vmul.f32 %v1512, %v1517
      %v1521 = vlaneseq
      %v1522 = vshrl.u32 %v1521, 7
      %v1523 = vsub.s32 0, %v1522
      %v1524 = vrot.slane %v1490, %v1523
      %v1526 = vadd.f32 %v1519, %v1524
      %v1527 = vmax.f32 %v1526, 0.0
      %v1528 = vpack.c.bf16 %v1527, %v1527
      %v1529 = vld [vmem:[%s8] sm:$0xff]
      %v1530 = vld [vmem:[%s8 + $0x8] sm:$0xff]
      %v1531 = vld [vmem:[%s8 + $0x10] sm:$0xff]
      %v1532 = vld [vmem:[%s8 + $0x18] sm:$0xff]
      %v1533 = vld [vmem:[%s8 + $0x20] sm:$0xff]
      %v1534 = vld [vmem:[%s8 + $0x28] sm:$0xff]
      %v1535 = vld [vmem:[%s8 + $0x30] sm:$0xff]
      %v1536 = vld [vmem:[%s8 + $0x38] sm:$0xff]
      %v1537 = vld [vmem:[%s8 + $0x40] sm:$0xff]
      %v1538 = vld [vmem:[%s8 + $0x48] sm:$0xff]
      %v1539 = vld [vmem:[%s8 + $0x50] sm:$0xff]
      %v1540 = vld [vmem:[%s8 + $0x58] sm:$0xff]
      %v1541 = vld [vmem:[%s8 + $0x60] sm:$0xff]
      %v1542 = vld [vmem:[%s8 + $0x68] sm:$0xff]
      %v1543 = vld [vmem:[%s8 + $0x70] sm:$0xff]
      %v1544 = vld [vmem:[%s8 + $0x78] sm:$0xff]
      %v1545 = vld [vmem:[%s9] sm:$0x3]
      %v1547 = vlaneseq
      %v1548 = vshrl.u32 %v1547, 7
      %v1549 = vsub.s32 0, %v1548
      %v1550 = vrot.slane %v1545, %v1549
      %v1551 = vlaneseq
      %v1552 = vshrl.u32 %v1551, 7
      %v1553 = vsub.s32 1, %v1552
      %v1554 = vrot.slane %v1545, %v1553
      %v1573 = vunpack.c.l.b16 %v1529
      %v1574 = vunpack.c.h.b16 %v1529
      %v1575 = vunpack.c.l.b16 %v1530
      %v1576 = vunpack.c.h.b16 %v1530
      %v1577 = vunpack.c.l.b16 %v1531
      %v1578 = vunpack.c.h.b16 %v1531
      %v1579 = vunpack.c.l.b16 %v1532
      %v1580 = vunpack.c.h.b16 %v1532
      %v1581 = vunpack.c.l.b16 %v1533
      %v1582 = vunpack.c.h.b16 %v1533
      %v1583 = vunpack.c.l.b16 %v1534
      %v1584 = vunpack.c.h.b16 %v1534
      %v1585 = vunpack.c.l.b16 %v1535
      %v1586 = vunpack.c.h.b16 %v1535
      %v1587 = vunpack.c.l.b16 %v1536
      %v1588 = vunpack.c.h.b16 %v1536
      %v1589 = vunpack.c.l.b16 %v1537
      %v1590 = vunpack.c.h.b16 %v1537
      %v1591 = vunpack.c.l.b16 %v1538
      %v1592 = vunpack.c.h.b16 %v1538
      %v1593 = vunpack.c.l.b16 %v1539
      %v1594 = vunpack.c.h.b16 %v1539
      %v1595 = vunpack.c.l.b16 %v1540
      %v1596 = vunpack.c.h.b16 %v1540
      %v1597 = vunpack.c.l.b16 %v1541
      %v1598 = vunpack.c.h.b16 %v1541
      %v1599 = vunpack.c.l.b16 %v1542
      %v1600 = vunpack.c.h.b16 %v1542
      %v1601 = vunpack.c.l.b16 %v1543
      %v1602 = vunpack.c.h.b16 %v1543
      %v1603 = vunpack.c.l.b16 %v1544
      %v1604 = vunpack.c.h.b16 %v1544
      %v1605 = vpack.c.b16 %v1575, %v1573
      %v1606 = vpack.c.b16 %v1576, %v1574
      %v1607 = vpack.c.b16 %v1579, %v1577
      %v1608 = vpack.c.b16 %v1580, %v1578
      %v1609 = vpack.c.b16 %v1583, %v1581
      %v1610 = vpack.c.b16 %v1584, %v1582
      %v1611 = vpack.c.b16 %v1587, %v1585
      %v1612 = vpack.c.b16 %v1588, %v1586
      %v1613 = vpack.c.b16 %v1591, %v1589
      %v1614 = vpack.c.b16 %v1592, %v1590
      %v1615 = vpack.c.b16 %v1595, %v1593
      %v1616 = vpack.c.b16 %v1596, %v1594
      %v1617 = vpack.c.b16 %v1599, %v1597
      %v1618 = vpack.c.b16 %v1600, %v1598
      %v1619 = vpack.c.b16 %v1603, %v1601
      %v1620 = vpack.c.b16 %v1604, %v1602
      %1637 = vmatprep.subr.bf16.mxu0 %v1606
      %1638 = vmatpush1.bf16.msra.mxu0 %v1605
      %1639 = vmatprep.subr.bf16.mxu0 %v1608
      %1640 = vmatpush1.bf16.msra.mxu0 %v1607
      %1641 = vmatprep.subr.bf16.mxu0 %v1610
      %1642 = vmatpush1.bf16.msra.mxu0 %v1609
      %1643 = vmatprep.subr.bf16.mxu0 %v1612
      %1644 = vmatpush1.bf16.msra.mxu0 %v1611
      %1645 = vmatprep.subr.bf16.mxu0 %v1614
      %1646 = vmatpush1.bf16.msra.mxu0 %v1613
      %1647 = vmatprep.subr.bf16.mxu0 %v1616
      %1648 = vmatpush1.bf16.msra.mxu0 %v1615
      %1649 = vmatprep.subr.bf16.mxu0 %v1618
      %1650 = vmatpush1.bf16.msra.mxu0 %v1617
      %1651 = vmatprep.subr.bf16.mxu0 %v1620
      %1652 = vmatpush1.bf16.msra.mxu0 %v1619
      %1653 = vmatprep.subr.bf16.mxu0 0
      %1654 = vmatpush1.bf16.msra.mxu0 0
      %1655 = vmatprep.subr.bf16.mxu0 0
      %1656 = vmatpush1.bf16.msra.mxu0 0
      %1657 = vmatprep.subr.bf16.mxu0 0
      %1658 = vmatpush1.bf16.msra.mxu0 0
      %1659 = vmatprep.subr.bf16.mxu0 0
      %1660 = vmatpush1.bf16.msra.mxu0 0
      %1661 = vmatprep.subr.bf16.mxu0 0
      %1662 = vmatpush1.bf16.msra.mxu0 0
      %1663 = vmatprep.subr.bf16.mxu0 0
      %1664 = vmatpush1.bf16.msra.mxu0 0
      %1665 = vmatprep.subr.bf16.mxu0 0
      %1666 = vmatpush1.bf16.msra.mxu0 0
      %1667 = vmatprep.subr.bf16.mxu0 0
      %1668 = vmatpush1.bf16.msra.mxu0 0
      %1669 = vmatprep.mubr.bf16.mxu0 0
      %1670 = vmatmul.mubr.bf16.gmra.mrb[0].mxu0 %v1528
      %v1671 = vpop.f32.mrb[0].mxu0
      %v1672 = vadd.f32 %v1550, %v1671
      %v1673 = vpop.f32.mrb[0].mxu0
      %v1674 = vadd.f32 %v1554, %v1673
      %v1675 = vpop.f32.mrb[0].mxu0
      %v1676 = vpop.f32.mrb[0].mxu0
      %1677 = vdwg.mxu0
      %v1678 = vrot.slane %v1672, 4
      %v1679 = vadd.f32 %v1672, %v1678
      %v1680 = vrot.slane %v1679, 2
      %v1681 = vadd.f32 %v1679, %v1680
      %v1682 = vrot.slane %v1681, 1
      %v1683 = vadd.f32 %v1681, %v1682
      %v1684 = vrot.slane %v1674, 4
      %v1685 = vadd.f32 %v1674, %v1684
      %v1686 = vrot.slane %v1685, 2
      %v1687 = vadd.f32 %v1685, %v1686
      %v1688 = vrot.slane %v1687, 1
      %v1689 = vadd.f32 %v1687, %v1688
      %v1690 = vmul.f32 %v1672, %v1672
      %v1691 = vmul.f32 %v1674, %v1674
      %v1692 = vrot.slane %v1690, 4
      %v1693 = vadd.f32 %v1690, %v1692
      %v1694 = vrot.slane %v1693, 2
      %v1695 = vadd.f32 %v1693, %v1694
      %v1696 = vrot.slane %v1695, 1
      %v1697 = vadd.f32 %v1695, %v1696
      %v1698 = vrot.slane %v1691, 4
      %v1699 = vadd.f32 %v1691, %v1698
      %v1700 = vrot.slane %v1699, 2
      %v1701 = vadd.f32 %v1699, %v1700
      %v1702 = vrot.slane %v1701, 1
      %v1703 = vadd.f32 %v1701, %v1702
      %v1704 = vmul.f32 %v1683, 0.125
      %v1705 = vmul.f32 %v1689, 0.125
      %v1706 = vmul.f32 %v1697, 0.125
      %v1707 = vmul.f32 %v1703, 0.125
      %v1708 = vmul.f32 %v1704, %v1704
      %v1709 = vmul.f32 %v1705, %v1705
      %v1710 = vsub.f32 %v1706, %v1708
      %v1711 = vsub.f32 %v1707, %v1709
      %v1712 = vmax.f32 %v1710, 0.0
      %v1713 = vmax.f32 %v1711, 0.0
      %v1714 = vsub.f32 %v1672, %v1704
      %v1715 = vsub.f32 %v1674, %v1705
      %v1716 = vadd.f32 %v1712, 1e-05
      %v1717 = vadd.f32 %v1713, 1e-05
      %v1718 = vrsqrt.pop %v1716
      %v1719 = vrsqrt.pop %v1717
      %v1720 = vmul.f32 %v1714, %v1718
      %v1721 = vmul.f32 %v1715, %v1719
      %1722 = vst [vmem:[%s534] sm:$0xff] %v1720
      %1723 = vst [vmem:[%s534 + $0x8] sm:$0xff] %v1721
      %v1724 = vpack.c.bf16 %v1720, %v1720
      %v1725 = vpack.c.bf16 %v1721, %v1721
      %v1726 = vld [vmem:[%s10] sm:$0xf]
      %v1727 = vld [vmem:[%s10 + $0x4] sm:$0xf]
      %v1728 = vld [vmem:[%s10 + $0x8] sm:$0xf]
      %v1729 = vld [vmem:[%s10 + $0xc] sm:$0xf]
      %v1730 = vld [vmem:[%s10 + $0x10] sm:$0xf]
      %v1731 = vld [vmem:[%s10 + $0x14] sm:$0xf]
      %v1732 = vld [vmem:[%s10 + $0x18] sm:$0xf]
      %v1733 = vld [vmem:[%s10 + $0x1c] sm:$0xf]
      %v1734 = vld [vmem:[%s10 + $0x20] sm:$0xf]
      %v1735 = vld [vmem:[%s10 + $0x24] sm:$0xf]
      %v1736 = vld [vmem:[%s10 + $0x28] sm:$0xf]
      %v1737 = vld [vmem:[%s10 + $0x2c] sm:$0xf]
      %v1738 = vld [vmem:[%s10 + $0x30] sm:$0xf]
      %v1739 = vld [vmem:[%s10 + $0x34] sm:$0xf]
      %v1740 = vld [vmem:[%s10 + $0x38] sm:$0xf]
      %v1741 = vld [vmem:[%s10 + $0x3c] sm:$0xf]
      %v1742 = vld [vmem:[%s10 + $0x40] sm:$0xf]
      %v1743 = vld [vmem:[%s10 + $0x44] sm:$0xf]
      %v1744 = vld [vmem:[%s10 + $0x48] sm:$0xf]
      %v1745 = vld [vmem:[%s10 + $0x4c] sm:$0xf]
      %v1746 = vld [vmem:[%s10 + $0x50] sm:$0xf]
      %v1747 = vld [vmem:[%s10 + $0x54] sm:$0xf]
      %v1748 = vld [vmem:[%s10 + $0x58] sm:$0xf]
      %v1749 = vld [vmem:[%s10 + $0x5c] sm:$0xf]
      %v1750 = vld [vmem:[%s10 + $0x60] sm:$0xf]
      %v1751 = vld [vmem:[%s10 + $0x64] sm:$0xf]
      %v1752 = vld [vmem:[%s10 + $0x68] sm:$0xf]
      %v1753 = vld [vmem:[%s10 + $0x6c] sm:$0xf]
      %v1754 = vld [vmem:[%s10 + $0x70] sm:$0xf]
      %v1755 = vld [vmem:[%s10 + $0x74] sm:$0xf]
      %v1756 = vld [vmem:[%s10 + $0x78] sm:$0xf]
      %v1757 = vld [vmem:[%s10 + $0x7c] sm:$0xf]
      %v1790 = vunpack.c.l.b16 %v1726
      %v1791 = vunpack.c.l.b16 %v1727
      %v1792 = vunpack.c.l.b16 %v1728
      %v1793 = vunpack.c.l.b16 %v1729
      %v1794 = vunpack.c.l.b16 %v1730
      %v1795 = vunpack.c.l.b16 %v1731
      %v1796 = vunpack.c.l.b16 %v1732
      %v1797 = vunpack.c.l.b16 %v1733
      %v1798 = vunpack.c.l.b16 %v1734
      %v1799 = vunpack.c.l.b16 %v1735
      %v1800 = vunpack.c.l.b16 %v1736
      %v1801 = vunpack.c.l.b16 %v1737
      %v1802 = vunpack.c.l.b16 %v1738
      %v1803 = vunpack.c.l.b16 %v1739
      %v1804 = vunpack.c.l.b16 %v1740
      %v1805 = vunpack.c.l.b16 %v1741
      %v1806 = vunpack.c.l.b16 %v1742
      %v1807 = vunpack.c.l.b16 %v1743
      %v1808 = vunpack.c.l.b16 %v1744
      %v1809 = vunpack.c.l.b16 %v1745
      %v1810 = vunpack.c.l.b16 %v1746
      %v1811 = vunpack.c.l.b16 %v1747
      %v1812 = vunpack.c.l.b16 %v1748
      %v1813 = vunpack.c.l.b16 %v1749
      %v1814 = vunpack.c.l.b16 %v1750
      %v1815 = vunpack.c.l.b16 %v1751
      %v1816 = vunpack.c.l.b16 %v1752
      %v1817 = vunpack.c.l.b16 %v1753
      %v1818 = vunpack.c.l.b16 %v1754
      %v1819 = vunpack.c.l.b16 %v1755
      %v1820 = vunpack.c.l.b16 %v1756
      %v1821 = vunpack.c.l.b16 %v1757
      %v1822 = vpack.c.b16 %v1791, %v1790
      %v1823 = vpack.c.b16 %v1793, %v1792
      %v1824 = vpack.c.b16 %v1795, %v1794
      %v1825 = vpack.c.b16 %v1797, %v1796
      %v1826 = vpack.c.b16 %v1799, %v1798
      %v1827 = vpack.c.b16 %v1801, %v1800
      %v1828 = vpack.c.b16 %v1803, %v1802
      %v1829 = vpack.c.b16 %v1805, %v1804
      %v1830 = vpack.c.b16 %v1807, %v1806
      %v1831 = vpack.c.b16 %v1809, %v1808
      %v1832 = vpack.c.b16 %v1811, %v1810
      %v1833 = vpack.c.b16 %v1813, %v1812
      %v1834 = vpack.c.b16 %v1815, %v1814
      %v1835 = vpack.c.b16 %v1817, %v1816
      %v1836 = vpack.c.b16 %v1819, %v1818
      %v1837 = vpack.c.b16 %v1821, %v1820
      %1854 = vmatprep.subr.bf16.mxu0 0
      %1855 = vmatpush1.bf16.msra.mxu0 %v1822
      %1856 = vmatprep.subr.bf16.mxu0 0
      %1857 = vmatpush1.bf16.msra.mxu0 %v1823
      %1858 = vmatprep.subr.bf16.mxu0 0
      %1859 = vmatpush1.bf16.msra.mxu0 %v1824
      %1860 = vmatprep.subr.bf16.mxu0 0
      %1861 = vmatpush1.bf16.msra.mxu0 %v1825
      %1862 = vmatprep.subr.bf16.mxu0 0
      %1863 = vmatpush1.bf16.msra.mxu0 %v1826
      %1864 = vmatprep.subr.bf16.mxu0 0
      %1865 = vmatpush1.bf16.msra.mxu0 %v1827
      %1866 = vmatprep.subr.bf16.mxu0 0
      %1867 = vmatpush1.bf16.msra.mxu0 %v1828
      %1868 = vmatprep.subr.bf16.mxu0 0
      %1869 = vmatpush1.bf16.msra.mxu0 %v1829
      %1870 = vmatprep.subr.bf16.mxu0 0
      %1871 = vmatpush1.bf16.msra.mxu0 %v1830
      %1872 = vmatprep.subr.bf16.mxu0 0
      %1873 = vmatpush1.bf16.msra.mxu0 %v1831
      %1874 = vmatprep.subr.bf16.mxu0 0
      %1875 = vmatpush1.bf16.msra.mxu0 %v1832
      %1876 = vmatprep.subr.bf16.mxu0 0
      %1877 = vmatpush1.bf16.msra.mxu0 %v1833
      %1878 = vmatprep.subr.bf16.mxu0 0
      %1879 = vmatpush1.bf16.msra.mxu0 %v1834
      %1880 = vmatprep.subr.bf16.mxu0 0
      %1881 = vmatpush1.bf16.msra.mxu0 %v1835
      %1882 = vmatprep.subr.bf16.mxu0 0
      %1883 = vmatpush1.bf16.msra.mxu0 %v1836
      %1884 = vmatprep.subr.bf16.mxu0 0
      %1885 = vmatpush1.bf16.msra.mxu0 %v1837
      %1886 = vmatprep.mubr.bf16.mxu0 %v1725
      %1887 = vmatmul.mubr.bf16.gmra.mrb[0].mxu0 %v1724
      %v1888 = vpop.f32.mrb[0].mxu0
      %v1889 = vadd.f32 0.0, %v1888
      %v1890 = vpop.f32.mrb[0].mxu0
      %v1891 = vpop.f32.mrb[0].mxu0
      %v1892 = vpop.f32.mrb[0].mxu0
      %1893 = vdwg.mxu0
      %v1894 = vld [vmem:[%s11] sm:$0x1]
      %v1895 = vld [vmem:[%s12] sm:$0x1]
      %v1896 = vrot.slane %v1889, 4
      %v1897 = vadd.f32 %v1889, %v1896
      %v1898 = vrot.slane %v1897, 2
      %v1899 = vadd.f32 %v1897, %v1898
      %v1900 = vrot.slane %v1899, 1
      %v1901 = vadd.f32 %v1899, %v1900
      %v1902 = vmul.f32 %v1889, %v1889
      %v1903 = vrot.slane %v1902, 4
      %v1904 = vadd.f32 %v1902, %v1903
      %v1905 = vrot.slane %v1904, 2
      %v1906 = vadd.f32 %v1904, %v1905
      %v1907 = vrot.slane %v1906, 1
      %v1908 = vadd.f32 %v1906, %v1907
      %v1909 = vmul.f32 %v1901, 0.125
      %v1910 = vmul.f32 %v1908, 0.125
      %v1911 = vmul.f32 %v1909, %v1909
      %v1912 = vsub.f32 %v1910, %v1911
      %v1913 = vmax.f32 %v1912, 0.0
      %v1914 = vsub.f32 %v1889, %v1909
      %v1915 = vadd.f32 %v1913, 1e-05
      %v1916 = vrsqrt.pop %v1915
      %v1917 = vmul.f32 %v1914, %v1916
      %v1919 = vlaneseq
      %v1920 = vshrl.u32 %v1919, 7
      %v1921 = vsub.s32 0, %v1920
      %v1922 = vrot.slane %v1894, %v1921
      %v1924 = vmul.f32 %v1917, %v1922
      %v1926 = vlaneseq
      %v1927 = vshrl.u32 %v1926, 7
      %v1928 = vsub.s32 0, %v1927
      %v1929 = vrot.slane %v1895, %v1928
      %v1931 = vadd.f32 %v1924, %v1929
      %v1932 = vmax.f32 %v1931, 0.0
      %v1933 = vpack.c.bf16 %v1932, %v1932
      %v1934 = vld [vmem:[%s13] sm:$0xff]
      %v1935 = vld [vmem:[%s13 + $0x8] sm:$0xff]
      %v1936 = vld [vmem:[%s13 + $0x10] sm:$0xff]
      %v1937 = vld [vmem:[%s13 + $0x18] sm:$0xff]
      %v1938 = vld [vmem:[%s13 + $0x20] sm:$0xff]
      %v1939 = vld [vmem:[%s13 + $0x28] sm:$0xff]
      %v1940 = vld [vmem:[%s13 + $0x30] sm:$0xff]
      %v1941 = vld [vmem:[%s13 + $0x38] sm:$0xff]
      %v1942 = vld [vmem:[%s13 + $0x40] sm:$0xff]
      %v1943 = vld [vmem:[%s13 + $0x48] sm:$0xff]
      %v1944 = vld [vmem:[%s13 + $0x50] sm:$0xff]
      %v1945 = vld [vmem:[%s13 + $0x58] sm:$0xff]
      %v1946 = vld [vmem:[%s13 + $0x60] sm:$0xff]
      %v1947 = vld [vmem:[%s13 + $0x68] sm:$0xff]
      %v1948 = vld [vmem:[%s13 + $0x70] sm:$0xff]
      %v1949 = vld [vmem:[%s13 + $0x78] sm:$0xff]
      %v1950 = vld [vmem:[%s14] sm:$0x3]
      %v1952 = vlaneseq
      %v1953 = vshrl.u32 %v1952, 7
      %v1954 = vsub.s32 0, %v1953
      %v1955 = vrot.slane %v1950, %v1954
      %v1956 = vlaneseq
      %v1957 = vshrl.u32 %v1956, 7
      %v1958 = vsub.s32 1, %v1957
      %v1959 = vrot.slane %v1950, %v1958
      %v1978 = vunpack.c.l.b16 %v1934
      %v1979 = vunpack.c.h.b16 %v1934
      %v1980 = vunpack.c.l.b16 %v1935
      %v1981 = vunpack.c.h.b16 %v1935
      %v1982 = vunpack.c.l.b16 %v1936
      %v1983 = vunpack.c.h.b16 %v1936
      %v1984 = vunpack.c.l.b16 %v1937
      %v1985 = vunpack.c.h.b16 %v1937
      %v1986 = vunpack.c.l.b16 %v1938
      %v1987 = vunpack.c.h.b16 %v1938
      %v1988 = vunpack.c.l.b16 %v1939
      %v1989 = vunpack.c.h.b16 %v1939
      %v1990 = vunpack.c.l.b16 %v1940
      %v1991 = vunpack.c.h.b16 %v1940
      %v1992 = vunpack.c.l.b16 %v1941
      %v1993 = vunpack.c.h.b16 %v1941
      %v1994 = vunpack.c.l.b16 %v1942
      %v1995 = vunpack.c.h.b16 %v1942
      %v1996 = vunpack.c.l.b16 %v1943
      %v1997 = vunpack.c.h.b16 %v1943
      %v1998 = vunpack.c.l.b16 %v1944
      %v1999 = vunpack.c.h.b16 %v1944
      %v2000 = vunpack.c.l.b16 %v1945
      %v2001 = vunpack.c.h.b16 %v1945
      %v2002 = vunpack.c.l.b16 %v1946
      %v2003 = vunpack.c.h.b16 %v1946
      %v2004 = vunpack.c.l.b16 %v1947
      %v2005 = vunpack.c.h.b16 %v1947
      %v2006 = vunpack.c.l.b16 %v1948
      %v2007 = vunpack.c.h.b16 %v1948
      %v2008 = vunpack.c.l.b16 %v1949
      %v2009 = vunpack.c.h.b16 %v1949
      %v2010 = vpack.c.b16 %v1980, %v1978
      %v2011 = vpack.c.b16 %v1981, %v1979
      %v2012 = vpack.c.b16 %v1984, %v1982
      %v2013 = vpack.c.b16 %v1985, %v1983
      %v2014 = vpack.c.b16 %v1988, %v1986
      %v2015 = vpack.c.b16 %v1989, %v1987
      %v2016 = vpack.c.b16 %v1992, %v1990
      %v2017 = vpack.c.b16 %v1993, %v1991
      %v2018 = vpack.c.b16 %v1996, %v1994
      %v2019 = vpack.c.b16 %v1997, %v1995
      %v2020 = vpack.c.b16 %v2000, %v1998
      %v2021 = vpack.c.b16 %v2001, %v1999
      %v2022 = vpack.c.b16 %v2004, %v2002
      %v2023 = vpack.c.b16 %v2005, %v2003
      %v2024 = vpack.c.b16 %v2008, %v2006
      %v2025 = vpack.c.b16 %v2009, %v2007
      %2042 = vmatprep.subr.bf16.mxu0 %v2011
      %2043 = vmatpush1.bf16.msra.mxu0 %v2010
      %2044 = vmatprep.subr.bf16.mxu0 %v2013
      %2045 = vmatpush1.bf16.msra.mxu0 %v2012
      %2046 = vmatprep.subr.bf16.mxu0 %v2015
      %2047 = vmatpush1.bf16.msra.mxu0 %v2014
      %2048 = vmatprep.subr.bf16.mxu0 %v2017
      %2049 = vmatpush1.bf16.msra.mxu0 %v2016
      %2050 = vmatprep.subr.bf16.mxu0 %v2019
      %2051 = vmatpush1.bf16.msra.mxu0 %v2018
      %2052 = vmatprep.subr.bf16.mxu0 %v2021
      %2053 = vmatpush1.bf16.msra.mxu0 %v2020
      %2054 = vmatprep.subr.bf16.mxu0 %v2023
      %2055 = vmatpush1.bf16.msra.mxu0 %v2022
      %2056 = vmatprep.subr.bf16.mxu0 %v2025
      %2057 = vmatpush1.bf16.msra.mxu0 %v2024
      %2058 = vmatprep.subr.bf16.mxu0 0
      %2059 = vmatpush1.bf16.msra.mxu0 0
      %2060 = vmatprep.subr.bf16.mxu0 0
      %2061 = vmatpush1.bf16.msra.mxu0 0
      %2062 = vmatprep.subr.bf16.mxu0 0
      %2063 = vmatpush1.bf16.msra.mxu0 0
      %2064 = vmatprep.subr.bf16.mxu0 0
      %2065 = vmatpush1.bf16.msra.mxu0 0
      %2066 = vmatprep.subr.bf16.mxu0 0
      %2067 = vmatpush1.bf16.msra.mxu0 0
      %2068 = vmatprep.subr.bf16.mxu0 0
      %2069 = vmatpush1.bf16.msra.mxu0 0
      %2070 = vmatprep.subr.bf16.mxu0 0
      %2071 = vmatpush1.bf16.msra.mxu0 0
      %2072 = vmatprep.subr.bf16.mxu0 0
      %2073 = vmatpush1.bf16.msra.mxu0 0
      %2074 = vmatprep.mubr.bf16.mxu0 0
      %2075 = vmatmul.mubr.bf16.gmra.mrb[0].mxu0 %v1933
      %v2076 = vpop.f32.mrb[0].mxu0
      %v2077 = vadd.f32 %v1955, %v2076
      %v2078 = vpop.f32.mrb[0].mxu0
      %v2079 = vadd.f32 %v1959, %v2078
      %v2080 = vpop.f32.mrb[0].mxu0
      %v2081 = vpop.f32.mrb[0].mxu0
      %2082 = vdwg.mxu0
      %2083 = vst [vmem:[%s529] sm:$0xff] %v2077
      %2084 = vst [vmem:[%s529 + $0x8] sm:$0xff] %v2079
      %p2085 = scmp.lt.s32.totalorder %s28, 1
      %s2086 = scalar_select %p2085, %s28, 1
      %s2087 = smul.addr %s2086, 2
      %s2088 = smul.addr %s2087, 8
      %s2089 = scalar_lea.vmem %s15, %s2088
      %p2090 = scmp.lt.s32.totalorder %s28, 1
      %s2091 = scalar_select %p2090, %s28, 1
      %s2092 = smul.addr %s2091, 2
      %s2093 = smul.addr %s2092, 8
      %s2094 = scalar_lea.vmem %s16, %s2093
      // Predicated region
      $region81: #{simsiam_forward.1} parent=79 // pred_check
        %p2095 = pneg %p366
      $region82: #{simsiam_forward.1} parent=79 // pred_check_branch
        %2097 = sbr.rel (%p2095) target = $region84
      $region83: #{simsiam_forward.1} parent=79 // pred_region
        _
      $region84: #{simsiam_forward.1} parent=79 // pred_fallthru
        _
      // Predicated region
      $region85: #{simsiam_forward.1} parent=79 // pred_check
        %p2098 = pneg %p392
      $region86: #{simsiam_forward.1} parent=79 // pred_check_branch
        %2100 = sbr.rel (%p2098) target = $region88
      $region87: #{simsiam_forward.1} parent=79 // pred_region
        _
      $region88: #{simsiam_forward.1} parent=79 // pred_fallthru
        _
    $region80: #{simsiam_forward.1} parent=5 // pred_fallthru
      _
    %p2101 = scmp.le.s32.totalorder 2, %s23
    // Predicated region
    $region89: #{simsiam_forward.1} parent=5 // pred_check
      %p2102 = pneg %p2101
    $region90: #{simsiam_forward.1} parent=5 // pred_check_branch
      %2104 = sbr.rel (%p2102) target = $region92
    $region91: #{simsiam_forward.1} parent=5 // pred_region
      %s2105 = ssub.s32 %s23, 2
      // Predicated region
      $region93: #{simsiam_forward.1} parent=91 // pred_check
        %p2106 = pneg %p372
      $region94: #{simsiam_forward.1} parent=91 // pred_check_branch
        %2108 = sbr.rel (%p2106) target = $region96
      $region95: #{simsiam_forward.1} parent=91 // pred_region
        %p2109 = scmp.lt.s32.totalorder %s29, 1
        %s2110 = scalar_select %p2109, %s29, 1
        %s2111 = smul.addr %s2110, 2
        %s2112 = smul.addr %s2111, 8
        %s2113 = scalar_lea.vmem %s15, %s2112
      $region96: #{simsiam_forward.1} parent=91 // pred_fallthru
        _
      // Predicated region
      $region97: #{simsiam_forward.1} parent=91 // pred_check
        %p2114 = pneg %p398
      $region98: #{simsiam_forward.1} parent=91 // pred_check_branch
        %2116 = sbr.rel (%p2114) target = $region100
      $region99: #{simsiam_forward.1} parent=91 // pred_region
        %p2117 = scmp.lt.s32.totalorder %s29, 1
        %s2118 = scalar_select %p2117, %s29, 1
        %s2119 = smul.addr %s2118, 2
        %s2120 = smul.addr %s2119, 8
        %s2121 = scalar_lea.vmem %s16, %s2120
      $region100: #{simsiam_forward.1} parent=91 // pred_fallthru
        _
    $region92: #{simsiam_forward.1} parent=5 // pred_fallthru
      _
  $region6: #{simsiam_forward.1} parent=0 // loop_footer
    %s27 = sadd.s32 1, %s23
  $region7: #{simsiam_forward.1} parent=0 // loop_footer_branch
    %22 = sbr.rel target = $region3
  $region8: #{simsiam_forward.1} parent=0 // loop_exit
    _

</llo_original>
